<compile_context>
chip_gen: v5e
topology: v5e:2x2
jax: 0.10.0
libtpu: 0.0.40
codegen_flags: <defaults>
</compile_context>

<pallas_src>
import math

import jax
import jax.numpy as jnp
from jax.experimental import pallas as pl
from jax.experimental.pallas import tpu as pltpu


# ----------------------------------------------------------------------------
# Pallas kernel: fused 3-layer MLP (Linear -> ReLU -> Linear -> ReLU -> Linear)
# Operands x / w* are bf16, biases f32; all matmuls accumulate in f32.
# ----------------------------------------------------------------------------
def _mlp3_kernel(x_ref, w1_ref, b1_ref, w2_ref, b2_ref, w3_ref, b3_ref, o_ref):
    # Layer 1 + ReLU   (bias/ReLU kept in f32 — v5e VPU has no bf16)
    h = jnp.dot(x_ref[...], w1_ref[...], preferred_element_type=jnp.float32)
    h = jnp.maximum(h + b1_ref[...], 0.0)
    # Layer 2 + ReLU
    h = jnp.dot(h.astype(jnp.bfloat16), w2_ref[...],
                preferred_element_type=jnp.float32)
    h = jnp.maximum(h + b2_ref[...], 0.0)
    # Final layer (no post_activation)
    out = jnp.dot(h.astype(jnp.bfloat16), w3_ref[...],
                  preferred_element_type=jnp.float32)
    out = out + b3_ref[...]
    o_ref[...] = out.astype(o_ref.dtype)


# ----------------------------------------------------------------------------
# Parameter preparation: bf16 cast + (optional) block-diagonal lane packing
# ----------------------------------------------------------------------------
def _round_up(n, m):
    return -(-n // m) * m


def prepare_kernel_params(params, pack):
    """Cast weights to bf16 and, if pack > 1, expand them to block-diagonal
    'packed' form so the kernel consumes/produces lane-dense (multiple-of-128)
    slabs with zero in-kernel relayout. Done once; weights stay resident."""
    w1 = params["w1"].astype(jnp.bfloat16)
    w2 = params["w2"].astype(jnp.bfloat16)
    w3 = params["w3"].astype(jnp.bfloat16)
    b1 = params["b1"].astype(jnp.float32)
    b2 = params["b2"].astype(jnp.float32)
    b3 = params["b3"].astype(jnp.float32)
    if pack == 1:
        return {"w1": w1, "b1": b1, "w2": w2, "b2": b2, "w3": w3, "b3": b3}
    eye = jnp.eye(pack, dtype=jnp.bfloat16)
    return {
        "w1": jnp.kron(eye, w1), "b1": jnp.tile(b1, (1, pack)),
        "w2": jnp.kron(eye, w2), "b2": jnp.tile(b2, (1, pack)),
        "w3": jnp.kron(eye, w3), "b3": jnp.tile(b3, (1, pack)),
    }


# ----------------------------------------------------------------------------
# Wrapper: tiling, lane packing, pallas_call
# ----------------------------------------------------------------------------
def mlp3_pallas(x2d, params, *, tile_m=2048, use_packed_layout=True):
    """x2d: (M, in_dim) float32. params: dict of w1,b1,w2,b2,w3,b3 (f32)."""
    M, Din = x2d.shape
    H = params["w1"].shape[1]
    Dout = params["w3"].shape[1]
    out_dtype = jnp.float32

    # Lane packing factor: pack rows so the output row width is exactly 128
    # lanes (unmasked vst) and the input row width is a multiple of 128.
    if use_packed_layout and Dout < 128 and (128 % Dout == 0):
        pack = 128 // Dout
    else:
        pack = 1

    kparams = prepare_kernel_params(params, pack)

    # Pad rows so the packed row-view is exact, cast to bf16 (halves HBM bytes).
    M_pad = _round_up(M, pack) if pack > 1 else M
    x = x2d.astype(jnp.bfloat16)
    if M_pad != M:
        x = jnp.pad(x, ((0, M_pad - M), (0, 0)))
    if pack > 1:
        # Pure row-major reshape in HBM (free): 16 logical rows -> 1 dense row.
        x = x.reshape(M_pad // pack, Din * pack)

    Mp = M_pad // pack                  # rows as seen by the kernel
    Dp, Hp, Op = Din * pack, H * pack, Dout * pack

    # Row tiling: tile_m logical rows -> tile_rows packed rows (multiple of 8).
    tile_rows = max(8, tile_m // pack)
    tile_rows = _round_up(min(tile_rows, Mp), 8)
    # Guarantee >=2 grid steps when possible: enables DMA/compute pipelining and
    # lets v7x shard the row axis across its two TensorCores.
    if Mp > 8 and pl.cdiv(Mp, tile_rows) < 2:
        tile_rows = max(8, _round_up(-(-Mp // 2), 8))
    grid = (pl.cdiv(Mp, tile_rows),)

    # Advisory cost estimate (actual kernel dims).
    flops = 2 * Mp * (Dp * Hp + Hp * Hp + Hp * Op)
    bytes_accessed = (
        int(x.size) * 2 + Mp * Op * 4
        + sum(int(v.size) * v.dtype.itemsize for v in kparams.values())
    )

    out = pl.pallas_call(
        _mlp3_kernel,
        out_shape=jax.ShapeDtypeStruct((Mp, Op), out_dtype),
        grid_spec=pltpu.PrefetchScalarGridSpec(
            num_scalar_prefetch=0,
            grid=grid,
            in_specs=[
                pl.BlockSpec((tile_rows, Dp), lambda i: (i, 0)),   # x rows (pipelined)
                pl.BlockSpec((Dp, Hp), lambda i: (0, 0)),          # w1 (resident)
                pl.BlockSpec((1, Hp), lambda i: (0, 0)),           # b1
                pl.BlockSpec((Hp, Hp), lambda i: (0, 0)),          # w2
                pl.BlockSpec((1, Hp), lambda i: (0, 0)),           # b2
                pl.BlockSpec((Hp, Op), lambda i: (0, 0)),          # w3
                pl.BlockSpec((1, Op), lambda i: (0, 0)),           # b3
            ],
            out_specs=pl.BlockSpec((tile_rows, Op), lambda i: (i, 0)),
        ),
        compiler_params=pltpu.CompilerParams(
            dimension_semantics=("parallel",),
        ),
        cost_estimate=pl.CostEstimate(
            flops=int(flops), transcendentals=0,
            bytes_accessed=int(bytes_accessed)),
    )(x, kparams["w1"], kparams["b1"], kparams["w2"], kparams["b2"],
      kparams["w3"], kparams["b3"])

    if pack > 1:
        out = out.reshape(M_pad, Dout)      # free row-major un-pack in HBM
    if M_pad != M:
        out = out[:M]
    return out


# ----------------------------------------------------------------------------
# Module wrapper reproducing _MultilayerModule.forward glue (reshape/unflatten)
# ----------------------------------------------------------------------------
def multilayer_forward(x, params, *, ndim=1, in_dim=32, tile_m=2048):
    unsqueeze = (in_dim == 0)
    if unsqueeze:
        x = jnp.expand_dims(x, axis=-ndim)
    if x.ndim > ndim + 1:
        batch_shape = x.shape[:-ndim]
        x = x.reshape((-1,) + x.shape[-ndim:])
    else:
        batch_shape = None
    # pre_activation = False, no norm / dropout
    y = mlp3_pallas(x, params, tile_m=tile_m)
    if batch_shape is not None:
        y = y.reshape(batch_shape + y.shape[1:])
    return y


# ----------------------------------------------------------------------------
# Deterministic parameter init (mirrors kaiming_uniform / zeros of the module)
# ----------------------------------------------------------------------------
def _kaiming_uniform(key, fan_in, shape, gain):
    std = gain / math.sqrt(fan_in)
    bound = math.sqrt(3.0) * std
    return jax.random.uniform(key, shape, jnp.float32, minval=-bound, maxval=bound)


def init_params(key, in_dim, hidden, out_dim):
    k1, k2, k3 = jax.random.split(key, 3)
    gain_relu = math.sqrt(2.0)   # calculate_gain('relu')
    gain_lin = 1.0               # final layer re-initialized with 'linear'
    return {
        # weights stored (in_features, out_features); fan_in = in_features
        "w1": _kaiming_uniform(k1, in_dim, (in_dim, hidden), gain_relu),
        "b1": jnp.zeros((1, hidden), jnp.float32),
        "w2": _kaiming_uniform(k2, hidden, (hidden, hidden), gain_relu),
        "b2": jnp.zeros((1, hidden), jnp.float32),
        "w3": _kaiming_uniform(k3, hidden, (hidden, out_dim), gain_lin),
        "b3": jnp.zeros((1, out_dim), jnp.float32),
    }


def reference_forward(x, params):
    """Pure-JAX reference mirroring the kernel's dtype path (bf16 operands,
    f32 accumulation, bf16 inter-layer activations)."""
    batch_shape = x.shape[:-1]
    w1 = params["w1"].astype(jnp.bfloat16)
    w2 = params["w2"].astype(jnp.bfloat16)
    w3 = params["w3"].astype(jnp.bfloat16)
    h = x.reshape(-1, x.shape[-1]).astype(jnp.bfloat16)
    h = jnp.dot(h, w1, preferred_element_type=jnp.float32) + params["b1"]
    h = jnp.maximum(h, 0.0).astype(jnp.bfloat16)
    h = jnp.dot(h, w2, preferred_element_type=jnp.float32) + params["b2"]
    h = jnp.maximum(h, 0.0).astype(jnp.bfloat16)
    y = jnp.dot(h, w3, preferred_element_type=jnp.float32) + params["b3"]
    return y.reshape(batch_shape + (y.shape[-1],))


if __name__ == "__main__":
    in_dim, hidden, out_dim = 32, 32, 8
    key = jax.random.PRNGKey(0)
    kx, kp = jax.random.split(key)

    # batch_shape = (8, 256) -> forward flattens to (2048, in_dim), giving a
    # multi-step parallel grid (pipelined DMA; both v7x TensorCores busy).
    x = jax.random.normal(kx, (8, 256, in_dim), dtype=jnp.float32)
    params = init_params(kp, in_dim, hidden, out_dim)

    y = multilayer_forward(x, params, ndim=1, in_dim=in_dim)
    y = jax.block_until_ready(y)

    y_ref = reference_forward(x, params)
    assert y.shape == (8, 256, out_dim), y.shape
    assert jnp.allclose(y, y_ref, atol=1e-2, rtol=1e-2), "mismatch vs reference"

    print("KERNEL_OK")
</pallas_src>

<mosaic_0001>
module attributes {stable_mosaic.version = 11 : i64} {
  func.func @_mlp3_kernel(%arg0: i32, %arg1: memref<64x512xbf16, #tpu.memory_space<vmem>>, %arg2: memref<512x512xbf16, #tpu.memory_space<vmem>>, %arg3: memref<1x512xf32, #tpu.memory_space<vmem>>, %arg4: memref<512x512xbf16, #tpu.memory_space<vmem>>, %arg5: memref<1x512xf32, #tpu.memory_space<vmem>>, %arg6: memref<512x128xbf16, #tpu.memory_space<vmem>>, %arg7: memref<1x128xf32, #tpu.memory_space<vmem>>, %arg8: memref<64x128xf32, #tpu.memory_space<vmem>>) attributes {dimension_semantics = [#tpu.dimension_semantics<parallel>], iteration_bounds = array<i64: 2>, scalar_prefetch = 0 : i64, scratch_operands = 0 : i64, tpu.core_type = #tpu.core_type<tc>, window_params = [{transform_indices = @transform_0, window_bounds = array<i64: 64, 512>}, {pipeline_mode = #tpu.pipeline_mode<synchronous>, transform_indices = @transform_1, window_bounds = array<i64: 512, 512>}, {pipeline_mode = #tpu.pipeline_mode<synchronous>, transform_indices = @transform_2, window_bounds = array<i64: 1, 512>}, {pipeline_mode = #tpu.pipeline_mode<synchronous>, transform_indices = @transform_3, window_bounds = array<i64: 512, 512>}, {pipeline_mode = #tpu.pipeline_mode<synchronous>, transform_indices = @transform_4, window_bounds = array<i64: 1, 512>}, {pipeline_mode = #tpu.pipeline_mode<synchronous>, transform_indices = @transform_5, window_bounds = array<i64: 512, 128>}, {pipeline_mode = #tpu.pipeline_mode<synchronous>, transform_indices = @transform_6, window_bounds = array<i64: 1, 128>}, {transform_indices = @transform_7, window_bounds = array<i64: 64, 128>}]} {
    %c0 = arith.constant 0 : index
    %c0_0 = arith.constant 0 : index
    %0 = vector.load %arg1[%c0, %c0_0] : memref<64x512xbf16, #tpu.memory_space<vmem>>, vector<64x512xbf16>
    %c0_1 = arith.constant 0 : index
    %c0_2 = arith.constant 0 : index
    %1 = vector.load %arg2[%c0_1, %c0_2] : memref<512x512xbf16, #tpu.memory_space<vmem>>, vector<512x512xbf16>
    %cst = arith.constant dense<0.000000e+00> : vector<64x512xf32>
    %2 = tpu.matmul %0, %1, %cst {dimension_numbers = #tpu.dot_dimension_numbers<[1], [0], [0], [1], [0, 0, 1, 1], [], []>} : vector<64x512xbf16>, vector<512x512xbf16>, vector<64x512xf32> -> vector<64x512xf32>
    %c0_3 = arith.constant 0 : index
    %c0_4 = arith.constant 0 : index
    %3 = vector.load %arg3[%c0_3, %c0_4] : memref<1x512xf32, #tpu.memory_space<vmem>>, vector<1x512xf32>
    %4 = vector.broadcast %3 : vector<1x512xf32> to vector<64x512xf32>
    %5 = arith.addf %2, %4 : vector<64x512xf32>
    %cst_5 = arith.constant 0.000000e+00 : f32
    %6 = vector.broadcast %cst_5 : f32 to vector<64x512xf32>
    %7 = arith.maximumf %5, %6 : vector<64x512xf32>
    %8 = arith.truncf %7 : vector<64x512xf32> to vector<64x512xbf16>
    %c0_6 = arith.constant 0 : index
    %c0_7 = arith.constant 0 : index
    %9 = vector.load %arg4[%c0_6, %c0_7] : memref<512x512xbf16, #tpu.memory_space<vmem>>, vector<512x512xbf16>
    %cst_8 = arith.constant dense<0.000000e+00> : vector<64x512xf32>
    %10 = tpu.matmul %8, %9, %cst_8 {dimension_numbers = #tpu.dot_dimension_numbers<[1], [0], [0], [1], [0, 0, 1, 1], [], []>} : vector<64x512xbf16>, vector<512x512xbf16>, vector<64x512xf32> -> vector<64x512xf32>
    %c0_9 = arith.constant 0 : index
    %c0_10 = arith.constant 0 : index
    %11 = vector.load %arg5[%c0_9, %c0_10] : memref<1x512xf32, #tpu.memory_space<vmem>>, vector<1x512xf32>
    %12 = vector.broadcast %11 : vector<1x512xf32> to vector<64x512xf32>
    %13 = arith.addf %10, %12 : vector<64x512xf32>
    %cst_11 = arith.constant 0.000000e+00 : f32
    %14 = vector.broadcast %cst_11 : f32 to vector<64x512xf32>
    %15 = arith.maximumf %13, %14 : vector<64x512xf32>
    %16 = arith.truncf %15 : vector<64x512xf32> to vector<64x512xbf16>
    %c0_12 = arith.constant 0 : index
    %c0_13 = arith.constant 0 : index
    %17 = vector.load %arg6[%c0_12, %c0_13] : memref<512x128xbf16, #tpu.memory_space<vmem>>, vector<512x128xbf16>
    %cst_14 = arith.constant dense<0.000000e+00> : vector<64x128xf32>
    %18 = tpu.matmul %16, %17, %cst_14 {dimension_numbers = #tpu.dot_dimension_numbers<[1], [0], [0], [1], [0, 0, 1, 1], [], []>} : vector<64x512xbf16>, vector<512x128xbf16>, vector<64x128xf32> -> vector<64x128xf32>
    %c0_15 = arith.constant 0 : index
    %c0_16 = arith.constant 0 : index
    %19 = vector.load %arg7[%c0_15, %c0_16] : memref<1x128xf32, #tpu.memory_space<vmem>>, vector<1x128xf32>
    %20 = vector.broadcast %19 : vector<1x128xf32> to vector<64x128xf32>
    %21 = arith.addf %18, %20 : vector<64x128xf32>
    %c0_17 = arith.constant 0 : index
    %c0_18 = arith.constant 0 : index
    %22 = vector.load %arg8[%c0_17, %c0_18] : memref<64x128xf32, #tpu.memory_space<vmem>>, vector<64x128xf32>
    tpu.vector_store %arg8[%c0_17, %c0_18], %21 {strides = array<i32>} : memref<64x128xf32, #tpu.memory_space<vmem>>, vector<64x128xf32>,
    return
  }
  func.func @transform_0(%arg0: i32) -> (i32, i32) {
    %c0_i32 = arith.constant 0 : i32
    %c0_i32_0 = arith.constant 0 : i32
    return %arg0, %c0_i32 : i32, i32
  }
  func.func @transform_1(%arg0: i32) -> (i32, i32) {
    %c0_i32 = arith.constant 0 : i32
    %c0_i32_0 = arith.constant 0 : i32
    %c0_i32_1 = arith.constant 0 : i32
    return %c0_i32, %c0_i32_0 : i32, i32
  }
  func.func @transform_2(%arg0: i32) -> (i32, i32) {
    %c0_i32 = arith.constant 0 : i32
    %c0_i32_0 = arith.constant 0 : i32
    %c0_i32_1 = arith.constant 0 : i32
    return %c0_i32, %c0_i32_0 : i32, i32
  }
  func.func @transform_3(%arg0: i32) -> (i32, i32) {
    %c0_i32 = arith.constant 0 : i32
    %c0_i32_0 = arith.constant 0 : i32
    %c0_i32_1 = arith.constant 0 : i32
    return %c0_i32, %c0_i32_0 : i32, i32
  }
  func.func @transform_4(%arg0: i32) -> (i32, i32) {
    %c0_i32 = arith.constant 0 : i32
    %c0_i32_0 = arith.constant 0 : i32
    %c0_i32_1 = arith.constant 0 : i32
    return %c0_i32, %c0_i32_0 : i32, i32
  }
  func.func @transform_5(%arg0: i32) -> (i32, i32) {
    %c0_i32 = arith.constant 0 : i32
    %c0_i32_0 = arith.constant 0 : i32
    %c0_i32_1 = arith.constant 0 : i32
    return %c0_i32, %c0_i32_0 : i32, i32
  }
  func.func @transform_6(%arg0: i32) -> (i32, i32) {
    %c0_i32 = arith.constant 0 : i32
    %c0_i32_0 = arith.constant 0 : i32
    %c0_i32_1 = arith.constant 0 : i32
    return %c0_i32, %c0_i32_0 : i32, i32
  }
  func.func @transform_7(%arg0: i32) -> (i32, i32) {
    %c0_i32 = arith.constant 0 : i32
    %c0_i32_0 = arith.constant 0 : i32
    return %arg0, %c0_i32 : i32, i32
  }
}

</mosaic_0001>

<llo_original>
// kernel: tpu_custom_call.1
$region0: #{tpu_custom_call.1}
  #allocation0 [shape = 'u32[]', space=smem, size = 0x4, offset = 0x4, fixed_abs, tag = 'smem constant byte address 0x4 - core index']
  #allocation1 [shape = 'u32[72,128]{1,0:T(1,128)}', space=vmem, size = 0x9000, scoped, tag = 'internal scratch']
  %s0 = inlined_call_operand.hbm [shape: bf16[128,512], index: 0, kind: input, shape index: {}]
  %s1 = inlined_call_operand.hbm [shape: bf16[512,512], index: 1, kind: input, shape index: {}]
  %s2 = inlined_call_operand.hbm [shape: f32[1,512], index: 2, kind: input, shape index: {}]
  %s3 = inlined_call_operand.hbm [shape: bf16[512,512], index: 3, kind: input, shape index: {}]
  %s4 = inlined_call_operand.hbm [shape: f32[1,512], index: 4, kind: input, shape index: {}]
  %s5 = inlined_call_operand.hbm [shape: bf16[512,128], index: 5, kind: input, shape index: {}]
  %s6 = inlined_call_operand.vmem [shape: f32[1,128], index: 6, kind: input, shape index: {}]
  %s7 = inlined_call_operand.hbm [shape: f32[128,128], index: 7, kind: output, shape index: {}]
  %s8 = sld [smem:[#allocation0]]
  $region85: #{tpu_custom_call.1} parent=0
    _
  %s10 = ssub.s32 1, %s8
  %s11 = scalar_select 0, %s10, %s8
  $region1: #{tpu_custom_call.1} parent=0
    #allocation2 [shape = 'u8[131072]{0}', space=vmem, size = 0x20000, scoped, tag = 'input window, operand 0']
    #allocation3 [shape = 's32[2]{0}', space=sflag, size = 0x8, scoped, tag = 'scoped memory for tpu_custom_call.1']
    #allocation4 [shape = 's32[2]{0}', space=sflag, size = 0x8, scoped, tag = 'scoped memory for tpu_custom_call.1']
    #allocation5 [shape = 'u8[524288]{0}', space=vmem, size = 0x80000, scoped, tag = 'input window, operand 1, single buffered']
    #allocation6 [shape = 's32[1]{0}', space=sflag, size = 0x4, scoped, tag = 'scoped memory for tpu_custom_call.1']
    #allocation7 [shape = 'u8[2048]{0}', space=vmem, size = 0x800, scoped, tag = 'input window, operand 2, single buffered']
    #allocation8 [shape = 'u8[524288]{0}', space=vmem, size = 0x80000, scoped, tag = 'input window, operand 3, single buffered']
    #allocation9 [shape = 's32[1]{0}', space=sflag, size = 0x4, scoped, tag = 'scoped memory for tpu_custom_call.1']
    #allocation10 [shape = 'u8[2048]{0}', space=vmem, size = 0x800, scoped, tag = 'input window, operand 4, single buffered']
    #allocation11 [shape = 'u8[131072]{0}', space=vmem, size = 0x20000, scoped, tag = 'input window, operand 5, single buffered']
    #allocation12 [shape = 's32[1]{0}', space=sflag, size = 0x4, scoped, tag = 'scoped memory for tpu_custom_call.1']
    #allocation13 [shape = 'u8[65536]{0}', space=vmem, size = 0x10000, scoped, tag = 'output window, operand 0']
    %12 = vsyncpa [#allocation3], 0
    %s13 = scalar_lea.sflag [#allocation3], 1
    %14 = vsyncpa %s13, 0
    %15 = vsyncpa [#allocation6], 0
    %16 = vsyncpa [#allocation9], 0
    %17 = vsyncpa [#allocation12], 0
    %18 = vsyncpa [#allocation4], 0
    %s19 = scalar_lea.sflag [#allocation4], 1
    %20 = vsyncpa %s19, 0
    loop: start=0, step=1, limit=4
    $region2: #{tpu_custom_call.1} parent=1 // loop_pre_header
      _
    $region3: #{tpu_custom_call.1} parent=1 // loop_header
      %s22 = sphi 0, %s26
      %p23 = scmp.ge.s32.totalorder %s22, 4
      %s32 = sphi 0, %s34
      %s35 = sphi 0, %s32
      %s36 = sphi 0, %s35
      %s52 = sphi 0, %s36
      %s56 = sphi 0, %s56
      %s58 = sphi 0, %s56
      %s59 = sphi 0, %s58
      %s73 = sphi 0, %s59
      %s77 = sphi 0, %s77
      %s79 = sphi 0, %s77
      %s80 = sphi 0, %s79
      %s94 = sphi 0, %s80
      %s98 = sphi 0, %s98
      %s100 = sphi 0, %s98
      %s101 = sphi 0, %s100
      %s115 = sphi 0, %s101
      %s119 = sphi 0, %s119
      %s121 = sphi 0, %s119
      %s122 = sphi 0, %s121
      %s136 = sphi 0, %s122
      %s140 = sphi 0, %s140
      %s142 = sphi 0, %s140
      %s143 = sphi 0, %s142
      %s157 = sphi 0, %s143
      %s161 = sphi 0, %s161
      %s163 = sphi 0, %s161
      %s164 = sphi 0, %s163
      %s178 = sphi 0, %s164
      %s184 = sphi 0, %s186
      %s187 = sphi 0, %s184
      %s188 = sphi 0, %s187
      %s204 = sphi 0, %s188
    $region4: #{tpu_custom_call.1} parent=1 // loop_header_branch
      %25 = sbr.rel (%p23) target = $region8
    $region5: #{tpu_custom_call.1} parent=1 // loop_body
      %s27 = ssub.s32 %s22, 1
      %s28 = ssub.s32 %s22, 2
      %s29 = sadd.s32 %s22, 1
      %s30 = ssub.s32 %s22, %s29
      %p31 = scmp.eq.s32.totalorder %s30, 0
      %s33 = sadd.s32 %s32, 1
      %s34 = scalar_select %p31, %s32, %s33
      %p37 = pneg %p31
      %p38 = scmp.eq.s32.totalorder %s22, 1
      %p39 = por %p37, %p38
      %p40 = scmp.ne.s32.totalorder %s32, %s35
      %p41 = scmp.eq.s32.totalorder %s22, 0
      %p42 = por %p40, %p41
      %p43 = scmp.ne.s32.totalorder %s32, %s35
      %p44 = scmp.eq.s32.totalorder %s27, 1
      %p45 = por %p43, %p44
      %p46 = scmp.ne.s32.totalorder %s35, %s36
      %p47 = scmp.eq.s32.totalorder %s27, 0
      %p48 = por %p46, %p47
      %p49 = scmp.ne.s32.totalorder %s35, %s36
      %p50 = scmp.eq.s32.totalorder %s28, 1
      %p51 = por %p49, %p50
      %p53 = scmp.ne.s32.totalorder %s36, %s52
      %p54 = scmp.eq.s32.totalorder %s28, 0
      %p55 = por %p53, %p54
      %s57 = sadd.s32 %s56, 1
      %p60 = scmp.eq.s32.totalorder %s22, 1
      %p61 = scmp.ne.s32.totalorder %s56, %s58
      %p62 = scmp.eq.s32.totalorder %s22, 0
      %p63 = por %p61, %p62
      %p64 = scmp.ne.s32.totalorder %s56, %s58
      %p65 = scmp.eq.s32.totalorder %s27, 1
      %p66 = por %p64, %p65
      %p67 = scmp.ne.s32.totalorder %s58, %s59
      %p68 = scmp.eq.s32.totalorder %s27, 0
      %p69 = por %p67, %p68
      %p70 = scmp.ne.s32.totalorder %s58, %s59
      %p71 = scmp.eq.s32.totalorder %s28, 1
      %p72 = por %p70, %p71
      %p74 = scmp.ne.s32.totalorder %s59, %s73
      %p75 = scmp.eq.s32.totalorder %s28, 0
      %p76 = por %p74, %p75
      %s78 = sadd.s32 %s77, 1
      %p81 = scmp.eq.s32.totalorder %s22, 1
      %p82 = scmp.ne.s32.totalorder %s77, %s79
      %p83 = scmp.eq.s32.totalorder %s22, 0
      %p84 = por %p82, %p83
      %p85 = scmp.ne.s32.totalorder %s77, %s79
      %p86 = scmp.eq.s32.totalorder %s27, 1
      %p87 = por %p85, %p86
      %p88 = scmp.ne.s32.totalorder %s79, %s80
      %p89 = scmp.eq.s32.totalorder %s27, 0
      %p90 = por %p88, %p89
      %p91 = scmp.ne.s32.totalorder %s79, %s80
      %p92 = scmp.eq.s32.totalorder %s28, 1
      %p93 = por %p91, %p92
      %p95 = scmp.ne.s32.totalorder %s80, %s94
      %p96 = scmp.eq.s32.totalorder %s28, 0
      %p97 = por %p95, %p96
      %s99 = sadd.s32 %s98, 1
      %p102 = scmp.eq.s32.totalorder %s22, 1
      %p103 = scmp.ne.s32.totalorder %s98, %s100
      %p104 = scmp.eq.s32.totalorder %s22, 0
      %p105 = por %p103, %p104
      %p106 = scmp.ne.s32.totalorder %s98, %s100
      %p107 = scmp.eq.s32.totalorder %s27, 1
      %p108 = por %p106, %p107
      %p109 = scmp.ne.s32.totalorder %s100, %s101
      %p110 = scmp.eq.s32.totalorder %s27, 0
      %p111 = por %p109, %p110
      %p112 = scmp.ne.s32.totalorder %s100, %s101
      %p113 = scmp.eq.s32.totalorder %s28, 1
      %p114 = por %p112, %p113
      %p116 = scmp.ne.s32.totalorder %s101, %s115
      %p117 = scmp.eq.s32.totalorder %s28, 0
      %p118 = por %p116, %p117
      %s120 = sadd.s32 %s119, 1
      %p123 = scmp.eq.s32.totalorder %s22, 1
      %p124 = scmp.ne.s32.totalorder %s119, %s121
      %p125 = scmp.eq.s32.totalorder %s22, 0
      %p126 = por %p124, %p125
      %p127 = scmp.ne.s32.totalorder %s119, %s121
      %p128 = scmp.eq.s32.totalorder %s27, 1
      %p129 = por %p127, %p128
      %p130 = scmp.ne.s32.totalorder %s121, %s122
      %p131 = scmp.eq.s32.totalorder %s27, 0
      %p132 = por %p130, %p131
      %p133 = scmp.ne.s32.totalorder %s121, %s122
      %p134 = scmp.eq.s32.totalorder %s28, 1
      %p135 = por %p133, %p134
      %p137 = scmp.ne.s32.totalorder %s122, %s136
      %p138 = scmp.eq.s32.totalorder %s28, 0
      %p139 = por %p137, %p138
      %s141 = sadd.s32 %s140, 1
      %p144 = scmp.eq.s32.totalorder %s22, 1
      %p145 = scmp.ne.s32.totalorder %s140, %s142
      %p146 = scmp.eq.s32.totalorder %s22, 0
      %p147 = por %p145, %p146
      %p148 = scmp.ne.s32.totalorder %s140, %s142
      %p149 = scmp.eq.s32.totalorder %s27, 1
      %p150 = por %p148, %p149
      %p151 = scmp.ne.s32.totalorder %s142, %s143
      %p152 = scmp.eq.s32.totalorder %s27, 0
      %p153 = por %p151, %p152
      %p154 = scmp.ne.s32.totalorder %s142, %s143
      %p155 = scmp.eq.s32.totalorder %s28, 1
      %p156 = por %p154, %p155
      %p158 = scmp.ne.s32.totalorder %s143, %s157
      %p159 = scmp.eq.s32.totalorder %s28, 0
      %p160 = por %p158, %p159
      %s162 = sadd.s32 %s161, 1
      %p165 = scmp.eq.s32.totalorder %s22, 1
      %p166 = scmp.ne.s32.totalorder %s161, %s163
      %p167 = scmp.eq.s32.totalorder %s22, 0
      %p168 = por %p166, %p167
      %p169 = scmp.ne.s32.totalorder %s161, %s163
      %p170 = scmp.eq.s32.totalorder %s27, 1
      %p171 = por %p169, %p170
      %p172 = scmp.ne.s32.totalorder %s163, %s164
      %p173 = scmp.eq.s32.totalorder %s27, 0
      %p174 = por %p172, %p173
      %p175 = scmp.ne.s32.totalorder %s163, %s164
      %p176 = scmp.eq.s32.totalorder %s28, 1
      %p177 = por %p175, %p176
      %p179 = scmp.ne.s32.totalorder %s164, %s178
      %p180 = scmp.eq.s32.totalorder %s28, 0
      %p181 = por %p179, %p180
      %s182 = ssub.s32 %s22, %s29
      %p183 = scmp.eq.s32.totalorder %s182, 0
      %s185 = sadd.s32 %s184, 1
      %s186 = scalar_select %p183, %s184, %s185
      %p189 = pneg %p183
      %p190 = scmp.eq.s32.totalorder %s22, 1
      %p191 = por %p189, %p190
      %p192 = scmp.ne.s32.totalorder %s184, %s187
      %p193 = scmp.eq.s32.totalorder %s22, 0
      %p194 = por %p192, %p193
      %p195 = scmp.ne.s32.totalorder %s184, %s187
      %p196 = scmp.eq.s32.totalorder %s27, 1
      %p197 = por %p195, %p196
      %p198 = scmp.ne.s32.totalorder %s187, %s188
      %p199 = scmp.eq.s32.totalorder %s27, 0
      %p200 = por %p198, %p199
      %p201 = scmp.ne.s32.totalorder %s187, %s188
      %p202 = scmp.eq.s32.totalorder %s28, 1
      %p203 = por %p201, %p202
      %p205 = scmp.ne.s32.totalorder %s188, %s204
      %p206 = scmp.eq.s32.totalorder %s28, 0
      %p207 = por %p205, %p206
      %p208 = scmp.le.s32.totalorder 1, %s22
      %p209 = scmp.lt.s32.totalorder %s22, 3
      %p210 = pnand %p208, %p209
      %p211 = pneg %p210
      // Predicated region
      $region9: #{tpu_custom_call.1} parent=5 // pred_check
        _
      $region10: #{tpu_custom_call.1} parent=5 // pred_check_branch
        %213 = sbr.rel (%p210) target = $region12
      $region11: #{tpu_custom_call.1} parent=5 // pred_region
        %s214 = ssub.s32 %s22, 1
        // Predicated region
        $region13: #{tpu_custom_call.1} parent=11 // pred_check
          %p215 = pneg %p69
        $region14: #{tpu_custom_call.1} parent=11 // pred_check_branch
          %217 = sbr.rel (%p215) target = $region16
        $region15: #{tpu_custom_call.1} parent=11 // pred_region
          %219 = vsyncadd [#allocation6], 0
          %s220 = sshll.u32 %s1, 4
          %s221 = int_to_ptr.hbm [resolvable:$true] %s220
          %s222 = sshll.u32 [#allocation5], 4
          %s223 = int_to_ptr.vmem [resolvable:$true] %s222
          %228 = dma.hbm_to_vmem [thread:$0]  %s221, 16384, %s223, [#allocation6], 256, 256, 16
        $region16: #{tpu_custom_call.1} parent=11 // pred_fallthru
          _
        // Predicated region
        $region17: #{tpu_custom_call.1} parent=11 // pred_check
          %p229 = pneg %p90
        $region18: #{tpu_custom_call.1} parent=11 // pred_check_branch
          %231 = sbr.rel (%p229) target = $region20
        $region19: #{tpu_custom_call.1} parent=11 // pred_region
          %233 = vsyncadd [#allocation6], 0
          %s235 = sshll.u32 %s2, 4
          %s236 = int_to_ptr.hbm [resolvable:$true] %s235
          %s237 = sshll.u32 [#allocation7], 4
          %s238 = int_to_ptr.vmem [resolvable:$true] %s237
          %240 = dma.hbm_to_vmem [thread:$0]  %s236, 64, %s238, [#allocation6]
        $region20: #{tpu_custom_call.1} parent=11 // pred_fallthru
          _
        // Predicated region
        $region21: #{tpu_custom_call.1} parent=11 // pred_check
          %p241 = pneg %p111
        $region22: #{tpu_custom_call.1} parent=11 // pred_check_branch
          %243 = sbr.rel (%p241) target = $region24
        $region23: #{tpu_custom_call.1} parent=11 // pred_region
          %245 = vsyncadd [#allocation9], 0
          %s246 = sshll.u32 %s3, 4
          %s247 = int_to_ptr.hbm [resolvable:$true] %s246
          %s248 = sshll.u32 [#allocation8], 4
          %s249 = int_to_ptr.vmem [resolvable:$true] %s248
          %254 = dma.hbm_to_vmem [thread:$0]  %s247, 16384, %s249, [#allocation9], 256, 256, 16
        $region24: #{tpu_custom_call.1} parent=11 // pred_fallthru
          _
        // Predicated region
        $region25: #{tpu_custom_call.1} parent=11 // pred_check
          %p255 = pneg %p132
        $region26: #{tpu_custom_call.1} parent=11 // pred_check_branch
          %257 = sbr.rel (%p255) target = $region28
        $region27: #{tpu_custom_call.1} parent=11 // pred_region
          %259 = vsyncadd [#allocation9], 0
          %s261 = sshll.u32 %s4, 4
          %s262 = int_to_ptr.hbm [resolvable:$true] %s261
          %s263 = sshll.u32 [#allocation10], 4
          %s264 = int_to_ptr.vmem [resolvable:$true] %s263
          %266 = dma.hbm_to_vmem [thread:$0]  %s262, 64, %s264, [#allocation9]
        $region28: #{tpu_custom_call.1} parent=11 // pred_fallthru
          _
        // Predicated region
        $region29: #{tpu_custom_call.1} parent=11 // pred_check
          %p267 = pneg %p153
        $region30: #{tpu_custom_call.1} parent=11 // pred_check_branch
          %269 = sbr.rel (%p267) target = $region32
        $region31: #{tpu_custom_call.1} parent=11 // pred_region
          %271 = vsyncadd [#allocation12], 0
          %s272 = sshll.u32 %s5, 4
          %s273 = int_to_ptr.hbm [resolvable:$true] %s272
          %s274 = sshll.u32 [#allocation11], 4
          %s275 = int_to_ptr.vmem [resolvable:$true] %s274
          %280 = dma.hbm_to_vmem [thread:$0]  %s273, 4096, %s275, [#allocation12], 64, 64, 4
        $region32: #{tpu_custom_call.1} parent=11 // pred_fallthru
          _
        // Predicated region
        $region33: #{tpu_custom_call.1} parent=11 // pred_check
          %p281 = pneg %p174
        $region34: #{tpu_custom_call.1} parent=11 // pred_check_branch
          %283 = sbr.rel (%p281) target = $region36
        $region35: #{tpu_custom_call.1} parent=11 // pred_region
          _
        $region36: #{tpu_custom_call.1} parent=11 // pred_fallthru
          _
      $region12: #{tpu_custom_call.1} parent=5 // pred_fallthru
        _
      %p284 = scmp.lt.s32.totalorder %s22, 2
      // Predicated region
      $region37: #{tpu_custom_call.1} parent=5 // pred_check
        %p285 = pneg %p284
      $region38: #{tpu_custom_call.1} parent=5 // pred_check_branch
        %287 = sbr.rel (%p285) target = $region40
      $region39: #{tpu_custom_call.1} parent=5 // pred_region
        // Predicated region
        $region41: #{tpu_custom_call.1} parent=39 // pred_check
          %p288 = pneg %p42
        $region42: #{tpu_custom_call.1} parent=39 // pred_check_branch
          %290 = sbr.rel (%p288) target = $region44
        $region43: #{tpu_custom_call.1} parent=39 // pred_region
          %s291 = sand.u32 %s32, 1
          %s292 = scalar_lea.sflag [#allocation3], %s291
          %s293 = sand.u32 %s32, 1
          %s294 = smul.addr %s293, 128
          %s295 = scalar_lea.vmem [#allocation2], %s294
          %s296 = smul.u32 8, %s22
          %298 = vsyncadd %s292, 0
          %s299 = smul.addr %s296, 4
          %s300 = smul.addr %s299, 4
          %s301 = scalar_lea.hbm %s0, %s300
          %s302 = sshll.u32 %s301, 4
          %s303 = int_to_ptr.hbm [resolvable:$true] %s302
          %s304 = sshll.u32 %s295, 4
          %s305 = int_to_ptr.vmem [resolvable:$true] %s304
          %310 = dma.hbm_to_vmem [thread:$0]  %s303, 2048, %s305, %s292, 256, 256, 16
        $region44: #{tpu_custom_call.1} parent=39 // pred_fallthru
          _
      $region40: #{tpu_custom_call.1} parent=5 // pred_fallthru
        _
      %p311 = scmp.le.s32.totalorder 1, %s22
      %p312 = scmp.lt.s32.totalorder %s22, 3
      %p313 = pnand %p311, %p312
      %p314 = pneg %p313
      // Predicated region
      $region45: #{tpu_custom_call.1} parent=5 // pred_check
        _
      $region46: #{tpu_custom_call.1} parent=5 // pred_check_branch
        %316 = sbr.rel (%p313) target = $region48
      $region47: #{tpu_custom_call.1} parent=5 // pred_region
        %s317 = ssub.s32 %s22, 1
        %s318 = sand.u32 %s35, 1
        %s319 = scalar_lea.sflag [#allocation3], %s318
        %s320 = sand.u32 %s35, 1
        %s321 = smul.addr %s320, 128
        %s322 = scalar_lea.vmem [#allocation2], %s321
        // Predicated region
        $region49: #{tpu_custom_call.1} parent=47 // pred_check
          %p323 = pneg %p48
        $region50: #{tpu_custom_call.1} parent=47 // pred_check_branch
          %325 = sbr.rel (%p323) target = $region52
        $region51: #{tpu_custom_call.1} parent=47 // pred_region
          %327 = dma.done %s319, 2048
        $region52: #{tpu_custom_call.1} parent=47 // pred_fallthru
          _
        // Predicated region
        $region53: #{tpu_custom_call.1} parent=47 // pred_check
          %p328 = pneg %p69
        $region54: #{tpu_custom_call.1} parent=47 // pred_check_branch
          %330 = sbr.rel (%p328) target = $region56
        $region55: #{tpu_custom_call.1} parent=47 // pred_region
          %332 = dma.done [#allocation6], 16384
        $region56: #{tpu_custom_call.1} parent=47 // pred_fallthru
          _
        // Predicated region
        $region57: #{tpu_custom_call.1} parent=47 // pred_check
          %p333 = pneg %p90
        $region58: #{tpu_custom_call.1} parent=47 // pred_check_branch
          %335 = sbr.rel (%p333) target = $region60
        $region59: #{tpu_custom_call.1} parent=47 // pred_region
          %337 = dma.done [#allocation6], 64
        $region60: #{tpu_custom_call.1} parent=47 // pred_fallthru
          _
        // Predicated region
        $region61: #{tpu_custom_call.1} parent=47 // pred_check
          %p338 = pneg %p111
        $region62: #{tpu_custom_call.1} parent=47 // pred_check_branch
          %340 = sbr.rel (%p338) target = $region64
        $region63: #{tpu_custom_call.1} parent=47 // pred_region
          %342 = dma.done [#allocation9], 16384
        $region64: #{tpu_custom_call.1} parent=47 // pred_fallthru
          _
        // Predicated region
        $region65: #{tpu_custom_call.1} parent=47 // pred_check
          %p343 = pneg %p132
        $region66: #{tpu_custom_call.1} parent=47 // pred_check_branch
          %345 = sbr.rel (%p343) target = $region68
        $region67: #{tpu_custom_call.1} parent=47 // pred_region
          %347 = dma.done [#allocation9], 64
        $region68: #{tpu_custom_call.1} parent=47 // pred_fallthru
          _
        // Predicated region
        $region69: #{tpu_custom_call.1} parent=47 // pred_check
          %p348 = pneg %p153
        $region70: #{tpu_custom_call.1} parent=47 // pred_check_branch
          %350 = sbr.rel (%p348) target = $region72
        $region71: #{tpu_custom_call.1} parent=47 // pred_region
          %352 = dma.done [#allocation12], 4096
        $region72: #{tpu_custom_call.1} parent=47 // pred_fallthru
          _
        %s353 = sand.u32 %s35, 1
        %s354 = scalar_lea.sflag [#allocation3], %s353
        %s355 = sand.u32 %s35, 1
        %s356 = smul.addr %s355, 128
        %s357 = scalar_lea.vmem [#allocation2], %s356
        %p358 = pneg %p48
        %p359 = pneg %p45
        %p360 = pneg %p69
        %p361 = pneg %p66
        %p362 = pneg %p90
        %p363 = pneg %p87
        %p364 = pneg %p111
        %p365 = pneg %p108
        %p366 = pneg %p132
        %p367 = pneg %p129
        %p368 = pneg %p153
        %p369 = pneg %p150
        %p370 = pneg %p174
        %p371 = pneg %p171
        %p372 = pneg %p200
        %p373 = pneg %p197
        %s374 = sand.u32 %s187, 1
        %s375 = scalar_lea.sflag [#allocation4], %s374
        %s376 = sand.u32 %s187, 1
        %s377 = smul.addr %s376, 64
        %s378 = scalar_lea.vmem [#allocation13], %s377
        %s379 = smul.u32 8, %s27
        %s380 = smul.u32 8, %s27
        %v381 = vld [vmem:[%s322] sm:$0xff]
        %v382 = vld [vmem:[%s322 + $0x8] sm:$0xff]
        %v383 = vld [vmem:[%s322 + $0x10] sm:$0xff]
        %v384 = vld [vmem:[%s322 + $0x18] sm:$0xff]
        %v385 = vld [vmem:[%s322 + $0x20] sm:$0xff]
        %v386 = vld [vmem:[%s322 + $0x28] sm:$0xff]
        %v387 = vld [vmem:[%s322 + $0x30] sm:$0xff]
        %v388 = vld [vmem:[%s322 + $0x38] sm:$0xff]
        %v389 = vld [vmem:[%s322 + $0x40] sm:$0xff]
        %v390 = vld [vmem:[%s322 + $0x48] sm:$0xff]
        %v391 = vld [vmem:[%s322 + $0x50] sm:$0xff]
        %v392 = vld [vmem:[%s322 + $0x58] sm:$0xff]
        %v393 = vld [vmem:[%s322 + $0x60] sm:$0xff]
        %v394 = vld [vmem:[%s322 + $0x68] sm:$0xff]
        %v395 = vld [vmem:[%s322 + $0x70] sm:$0xff]
        %v396 = vld [vmem:[%s322 + $0x78] sm:$0xff]
        %v397 = vld [vmem:[#allocation5] sm:$0xff]
        %v398 = vld [vmem:[#allocation5 + $0x8] sm:$0xff]
        %v399 = vld [vmem:[#allocation5 + $0x10] sm:$0xff]
        %v400 = vld [vmem:[#allocation5 + $0x18] sm:$0xff]
        %v401 = vld [vmem:[#allocation5 + $0x20] sm:$0xff]
        %v402 = vld [vmem:[#allocation5 + $0x28] sm:$0xff]
        %v403 = vld [vmem:[#allocation5 + $0x30] sm:$0xff]
        %v404 = vld [vmem:[#allocation5 + $0x38] sm:$0xff]
        %v405 = vld [vmem:[#allocation5 + $0x40] sm:$0xff]
        %v406 = vld [vmem:[#allocation5 + $0x48] sm:$0xff]
        %v407 = vld [vmem:[#allocation5 + $0x50] sm:$0xff]
        %v408 = vld [vmem:[#allocation5 + $0x58] sm:$0xff]
        %v409 = vld [vmem:[#allocation5 + $0x60] sm:$0xff]
        %v410 = vld [vmem:[#allocation5 + $0x68] sm:$0xff]
        %v411 = vld [vmem:[#allocation5 + $0x70] sm:$0xff]
        %v412 = vld [vmem:[#allocation5 + $0x78] sm:$0xff]
        %v413 = vld [vmem:[#allocation5 + $0x80] sm:$0xff]
        %v414 = vld [vmem:[#allocation5 + $0x88] sm:$0xff]
        %v415 = vld [vmem:[#allocation5 + $0x90] sm:$0xff]
        %v416 = vld [vmem:[#allocation5 + $0x98] sm:$0xff]
        %v417 = vld [vmem:[#allocation5 + $0xa0] sm:$0xff]
        %v418 = vld [vmem:[#allocation5 + $0xa8] sm:$0xff]
        %v419 = vld [vmem:[#allocation5 + $0xb0] sm:$0xff]
        %v420 = vld [vmem:[#allocation5 + $0xb8] sm:$0xff]
        %v421 = vld [vmem:[#allocation5 + $0xc0] sm:$0xff]
        %v422 = vld [vmem:[#allocation5 + $0xc8] sm:$0xff]
        %v423 = vld [vmem:[#allocation5 + $0xd0] sm:$0xff]
        %v424 = vld [vmem:[#allocation5 + $0xd8] sm:$0xff]
        %v425 = vld [vmem:[#allocation5 + $0xe0] sm:$0xff]
        %v426 = vld [vmem:[#allocation5 + $0xe8] sm:$0xff]
        %v427 = vld [vmem:[#allocation5 + $0xf0] sm:$0xff]
        %v428 = vld [vmem:[#allocation5 + $0xf8] sm:$0xff]
        %v429 = vld [vmem:[#allocation5 + $0x100] sm:$0xff]
        %v430 = vld [vmem:[#allocation5 + $0x108] sm:$0xff]
        %v431 = vld [vmem:[#allocation5 + $0x110] sm:$0xff]
        %v432 = vld [vmem:[#allocation5 + $0x118] sm:$0xff]
        %v433 = vld [vmem:[#allocation5 + $0x120] sm:$0xff]
        %v434 = vld [vmem:[#allocation5 + $0x128] sm:$0xff]
        %v435 = vld [vmem:[#allocation5 + $0x130] sm:$0xff]
        %v436 = vld [vmem:[#allocation5 + $0x138] sm:$0xff]
        %v437 = vld [vmem:[#allocation5 + $0x140] sm:$0xff]
        %v438 = vld [vmem:[#allocation5 + $0x148] sm:$0xff]
        %v439 = vld [vmem:[#allocation5 + $0x150] sm:$0xff]
        %v440 = vld [vmem:[#allocation5 + $0x158] sm:$0xff]
        %v441 = vld [vmem:[#allocation5 + $0x160] sm:$0xff]
        %v442 = vld [vmem:[#allocation5 + $0x168] sm:$0xff]
        %v443 = vld [vmem:[#allocation5 + $0x170] sm:$0xff]
        %v444 = vld [vmem:[#allocation5 + $0x178] sm:$0xff]
        %v445 = vld [vmem:[#allocation5 + $0x180] sm:$0xff]
        %v446 = vld [vmem:[#allocation5 + $0x188] sm:$0xff]
        %v447 = vld [vmem:[#allocation5 + $0x190] sm:$0xff]
        %v448 = vld [vmem:[#allocation5 + $0x198] sm:$0xff]
        %v449 = vld [vmem:[#allocation5 + $0x1a0] sm:$0xff]
        %v450 = vld [vmem:[#allocation5 + $0x1a8] sm:$0xff]
        %v451 = vld [vmem:[#allocation5 + $0x1b0] sm:$0xff]
        %v452 = vld [vmem:[#allocation5 + $0x1b8] sm:$0xff]
        %v453 = vld [vmem:[#allocation5 + $0x1c0] sm:$0xff]
        %v454 = vld [vmem:[#allocation5 + $0x1c8] sm:$0xff]
        %v455 = vld [vmem:[#allocation5 + $0x1d0] sm:$0xff]
        %v456 = vld [vmem:[#allocation5 + $0x1d8] sm:$0xff]
        %v457 = vld [vmem:[#allocation5 + $0x1e0] sm:$0xff]
        %v458 = vld [vmem:[#allocation5 + $0x1e8] sm:$0xff]
        %v459 = vld [vmem:[#allocation5 + $0x1f0] sm:$0xff]
        %v460 = vld [vmem:[#allocation5 + $0x1f8] sm:$0xff]
        %v461 = vld [vmem:[#allocation5 + $0x200] sm:$0xff]
        %v462 = vld [vmem:[#allocation5 + $0x208] sm:$0xff]
        %v463 = vld [vmem:[#allocation5 + $0x210] sm:$0xff]
        %v464 = vld [vmem:[#allocation5 + $0x218] sm:$0xff]
        %v465 = vld [vmem:[#allocation5 + $0x220] sm:$0xff]
        %v466 = vld [vmem:[#allocation5 + $0x228] sm:$0xff]
        %v467 = vld [vmem:[#allocation5 + $0x230] sm:$0xff]
        %v468 = vld [vmem:[#allocation5 + $0x238] sm:$0xff]
        %v469 = vld [vmem:[#allocation5 + $0x240] sm:$0xff]
        %v470 = vld [vmem:[#allocation5 + $0x248] sm:$0xff]
        %v471 = vld [vmem:[#allocation5 + $0x250] sm:$0xff]
        %v472 = vld [vmem:[#allocation5 + $0x258] sm:$0xff]
        %v473 = vld [vmem:[#allocation5 + $0x260] sm:$0xff]
        %v474 = vld [vmem:[#allocation5 + $0x268] sm:$0xff]
        %v475 = vld [vmem:[#allocation5 + $0x270] sm:$0xff]
        %v476 = vld [vmem:[#allocation5 + $0x278] sm:$0xff]
        %v477 = vld [vmem:[#allocation5 + $0x280] sm:$0xff]
        %v478 = vld [vmem:[#allocation5 + $0x288] sm:$0xff]
        %v479 = vld [vmem:[#allocation5 + $0x290] sm:$0xff]
        %v480 = vld [vmem:[#allocation5 + $0x298] sm:$0xff]
        %v481 = vld [vmem:[#allocation5 + $0x2a0] sm:$0xff]
        %v482 = vld [vmem:[#allocation5 + $0x2a8] sm:$0xff]
        %v483 = vld [vmem:[#allocation5 + $0x2b0] sm:$0xff]
        %v484 = vld [vmem:[#allocation5 + $0x2b8] sm:$0xff]
        %v485 = vld [vmem:[#allocation5 + $0x2c0] sm:$0xff]
        %v486 = vld [vmem:[#allocation5 + $0x2c8] sm:$0xff]
        %v487 = vld [vmem:[#allocation5 + $0x2d0] sm:$0xff]
        %v488 = vld [vmem:[#allocation5 + $0x2d8] sm:$0xff]
        %v489 = vld [vmem:[#allocation5 + $0x2e0] sm:$0xff]
        %v490 = vld [vmem:[#allocation5 + $0x2e8] sm:$0xff]
        %v491 = vld [vmem:[#allocation5 + $0x2f0] sm:$0xff]
        %v492 = vld [vmem:[#allocation5 + $0x2f8] sm:$0xff]
        %v493 = vld [vmem:[#allocation5 + $0x300] sm:$0xff]
        %v494 = vld [vmem:[#allocation5 + $0x308] sm:$0xff]
        %v495 = vld [vmem:[#allocation5 + $0x310] sm:$0xff]
        %v496 = vld [vmem:[#allocation5 + $0x318] sm:$0xff]
        %v497 = vld [vmem:[#allocation5 + $0x320] sm:$0xff]
        %v498 = vld [vmem:[#allocation5 + $0x328] sm:$0xff]
        %v499 = vld [vmem:[#allocation5 + $0x330] sm:$0xff]
        %v500 = vld [vmem:[#allocation5 + $0x338] sm:$0xff]
        %v501 = vld [vmem:[#allocation5 + $0x340] sm:$0xff]
        %v502 = vld [vmem:[#allocation5 + $0x348] sm:$0xff]
        %v503 = vld [vmem:[#allocation5 + $0x350] sm:$0xff]
        %v504 = vld [vmem:[#allocation5 + $0x358] sm:$0xff]
        %v505 = vld [vmem:[#allocation5 + $0x360] sm:$0xff]
        %v506 = vld [vmem:[#allocation5 + $0x368] sm:$0xff]
        %v507 = vld [vmem:[#allocation5 + $0x370] sm:$0xff]
        %v508 = vld [vmem:[#allocation5 + $0x378] sm:$0xff]
        %v509 = vld [vmem:[#allocation5 + $0x380] sm:$0xff]
        %v510 = vld [vmem:[#allocation5 + $0x388] sm:$0xff]
        %v511 = vld [vmem:[#allocation5 + $0x390] sm:$0xff]
        %v512 = vld [vmem:[#allocation5 + $0x398] sm:$0xff]
        %v513 = vld [vmem:[#allocation5 + $0x3a0] sm:$0xff]
        %v514 = vld [vmem:[#allocation5 + $0x3a8] sm:$0xff]
        %v515 = vld [vmem:[#allocation5 + $0x3b0] sm:$0xff]
        %v516 = vld [vmem:[#allocation5 + $0x3b8] sm:$0xff]
        %v517 = vld [vmem:[#allocation5 + $0x3c0] sm:$0xff]
        %v518 = vld [vmem:[#allocation5 + $0x3c8] sm:$0xff]
        %v519 = vld [vmem:[#allocation5 + $0x3d0] sm:$0xff]
        %v520 = vld [vmem:[#allocation5 + $0x3d8] sm:$0xff]
        %v521 = vld [vmem:[#allocation5 + $0x3e0] sm:$0xff]
        %v522 = vld [vmem:[#allocation5 + $0x3e8] sm:$0xff]
        %v523 = vld [vmem:[#allocation5 + $0x3f0] sm:$0xff]
        %v524 = vld [vmem:[#allocation5 + $0x3f8] sm:$0xff]
        %v525 = vld [vmem:[#allocation7] sm:$0xf]
        %v527 = vperm.slane %v525, 0
        %v528 = vperm.slane %v525, 1
        %v529 = vperm.slane %v525, 2
        %v530 = vperm.slane %v525, 3
        %v551 = vunpack.c.l.b16 %v381
        %v552 = vunpack.c.h.b16 %v381
        %v553 = vunpack.c.l.b16 %v382
        %v554 = vunpack.c.h.b16 %v382
        %v555 = vunpack.c.l.b16 %v383
        %v556 = vunpack.c.h.b16 %v383
        %v557 = vunpack.c.l.b16 %v384
        %v558 = vunpack.c.h.b16 %v384
        %v559 = vunpack.c.l.b16 %v385
        %v560 = vunpack.c.h.b16 %v385
        %v561 = vunpack.c.l.b16 %v386
        %v562 = vunpack.c.h.b16 %v386
        %v563 = vunpack.c.l.b16 %v387
        %v564 = vunpack.c.h.b16 %v387
        %v565 = vunpack.c.l.b16 %v388
        %v566 = vunpack.c.h.b16 %v388
        %v567 = vunpack.c.l.b16 %v389
        %v568 = vunpack.c.h.b16 %v389
        %v569 = vunpack.c.l.b16 %v390
        %v570 = vunpack.c.h.b16 %v390
        %v571 = vunpack.c.l.b16 %v391
        %v572 = vunpack.c.h.b16 %v391
        %v573 = vunpack.c.l.b16 %v392
        %v574 = vunpack.c.h.b16 %v392
        %v575 = vunpack.c.l.b16 %v393
        %v576 = vunpack.c.h.b16 %v393
        %v577 = vunpack.c.l.b16 %v394
        %v578 = vunpack.c.h.b16 %v394
        %v579 = vunpack.c.l.b16 %v395
        %v580 = vunpack.c.h.b16 %v395
        %v581 = vunpack.c.l.b16 %v396
        %v582 = vunpack.c.h.b16 %v396
        %v583 = vpack.c.b16 %v555, %v551
        %v584 = vpack.c.b16 %v556, %v552
        %v585 = vpack.c.b16 %v557, %v553
        %v586 = vpack.c.b16 %v558, %v554
        %v587 = vpack.c.b16 %v563, %v559
        %v588 = vpack.c.b16 %v564, %v560
        %v589 = vpack.c.b16 %v565, %v561
        %v590 = vpack.c.b16 %v566, %v562
        %v591 = vpack.c.b16 %v571, %v567
        %v592 = vpack.c.b16 %v572, %v568
        %v593 = vpack.c.b16 %v573, %v569
        %v594 = vpack.c.b16 %v574, %v570
        %v595 = vpack.c.b16 %v579, %v575
        %v596 = vpack.c.b16 %v580, %v576
        %v597 = vpack.c.b16 %v581, %v577
        %v598 = vpack.c.b16 %v582, %v578
        %v743 = vunpack.c.l.b16 %v397
        %v744 = vunpack.c.h.b16 %v397
        %v745 = vunpack.c.l.b16 %v398
        %v746 = vunpack.c.h.b16 %v398
        %v747 = vunpack.c.l.b16 %v399
        %v748 = vunpack.c.h.b16 %v399
        %v749 = vunpack.c.l.b16 %v400
        %v750 = vunpack.c.h.b16 %v400
        %v751 = vunpack.c.l.b16 %v401
        %v752 = vunpack.c.h.b16 %v401
        %v753 = vunpack.c.l.b16 %v402
        %v754 = vunpack.c.h.b16 %v402
        %v755 = vunpack.c.l.b16 %v403
        %v756 = vunpack.c.h.b16 %v403
        %v757 = vunpack.c.l.b16 %v404
        %v758 = vunpack.c.h.b16 %v404
        %v759 = vunpack.c.l.b16 %v405
        %v760 = vunpack.c.h.b16 %v405
        %v761 = vunpack.c.l.b16 %v406
        %v762 = vunpack.c.h.b16 %v406
        %v763 = vunpack.c.l.b16 %v407
        %v764 = vunpack.c.h.b16 %v407
        %v765 = vunpack.c.l.b16 %v408
        %v766 = vunpack.c.h.b16 %v408
        %v767 = vunpack.c.l.b16 %v409
        %v768 = vunpack.c.h.b16 %v409
        %v769 = vunpack.c.l.b16 %v410
        %v770 = vunpack.c.h.b16 %v410
        %v771 = vunpack.c.l.b16 %v411
        %v772 = vunpack.c.h.b16 %v411
        %v773 = vunpack.c.l.b16 %v412
        %v774 = vunpack.c.h.b16 %v412
        %v775 = vunpack.c.l.b16 %v413
        %v776 = vunpack.c.h.b16 %v413
        %v777 = vunpack.c.l.b16 %v414
        %v778 = vunpack.c.h.b16 %v414
        %v779 = vunpack.c.l.b16 %v415
        %v780 = vunpack.c.h.b16 %v415
        %v781 = vunpack.c.l.b16 %v416
        %v782 = vunpack.c.h.b16 %v416
        %v783 = vunpack.c.l.b16 %v417
        %v784 = vunpack.c.h.b16 %v417
        %v785 = vunpack.c.l.b16 %v418
        %v786 = vunpack.c.h.b16 %v418
        %v787 = vunpack.c.l.b16 %v419
        %v788 = vunpack.c.h.b16 %v419
        %v789 = vunpack.c.l.b16 %v420
        %v790 = vunpack.c.h.b16 %v420
        %v791 = vunpack.c.l.b16 %v421
        %v792 = vunpack.c.h.b16 %v421
        %v793 = vunpack.c.l.b16 %v422
        %v794 = vunpack.c.h.b16 %v422
        %v795 = vunpack.c.l.b16 %v423
        %v796 = vunpack.c.h.b16 %v423
        %v797 = vunpack.c.l.b16 %v424
        %v798 = vunpack.c.h.b16 %v424
        %v799 = vunpack.c.l.b16 %v425
        %v800 = vunpack.c.h.b16 %v425
        %v801 = vunpack.c.l.b16 %v426
        %v802 = vunpack.c.h.b16 %v426
        %v803 = vunpack.c.l.b16 %v427
        %v804 = vunpack.c.h.b16 %v427
        %v805 = vunpack.c.l.b16 %v428
        %v806 = vunpack.c.h.b16 %v428
        %v807 = vunpack.c.l.b16 %v429
        %v808 = vunpack.c.h.b16 %v429
        %v809 = vunpack.c.l.b16 %v430
        %v810 = vunpack.c.h.b16 %v430
        %v811 = vunpack.c.l.b16 %v431
        %v812 = vunpack.c.h.b16 %v431
        %v813 = vunpack.c.l.b16 %v432
        %v814 = vunpack.c.h.b16 %v432
        %v815 = vunpack.c.l.b16 %v433
        %v816 = vunpack.c.h.b16 %v433
        %v817 = vunpack.c.l.b16 %v434
        %v818 = vunpack.c.h.b16 %v434
        %v819 = vunpack.c.l.b16 %v435
        %v820 = vunpack.c.h.b16 %v435
        %v821 = vunpack.c.l.b16 %v436
        %v822 = vunpack.c.h.b16 %v436
        %v823 = vunpack.c.l.b16 %v437
        %v824 = vunpack.c.h.b16 %v437
        %v825 = vunpack.c.l.b16 %v438
        %v826 = vunpack.c.h.b16 %v438
        %v827 = vunpack.c.l.b16 %v439
        %v828 = vunpack.c.h.b16 %v439
        %v829 = vunpack.c.l.b16 %v440
        %v830 = vunpack.c.h.b16 %v440
        %v831 = vunpack.c.l.b16 %v441
        %v832 = vunpack.c.h.b16 %v441
        %v833 = vunpack.c.l.b16 %v442
        %v834 = vunpack.c.h.b16 %v442
        %v835 = vunpack.c.l.b16 %v443
        %v836 = vunpack.c.h.b16 %v443
        %v837 = vunpack.c.l.b16 %v444
        %v838 = vunpack.c.h.b16 %v444
        %v839 = vunpack.c.l.b16 %v445
        %v840 = vunpack.c.h.b16 %v445
        %v841 = vunpack.c.l.b16 %v446
        %v842 = vunpack.c.h.b16 %v446
        %v843 = vunpack.c.l.b16 %v447
        %v844 = vunpack.c.h.b16 %v447
        %v845 = vunpack.c.l.b16 %v448
        %v846 = vunpack.c.h.b16 %v448
        %v847 = vunpack.c.l.b16 %v449
        %v848 = vunpack.c.h.b16 %v449
        %v849 = vunpack.c.l.b16 %v450
        %v850 = vunpack.c.h.b16 %v450
        %v851 = vunpack.c.l.b16 %v451
        %v852 = vunpack.c.h.b16 %v451
        %v853 = vunpack.c.l.b16 %v452
        %v854 = vunpack.c.h.b16 %v452
        %v855 = vunpack.c.l.b16 %v453
        %v856 = vunpack.c.h.b16 %v453
        %v857 = vunpack.c.l.b16 %v454
        %v858 = vunpack.c.h.b16 %v454
        %v859 = vunpack.c.l.b16 %v455
        %v860 = vunpack.c.h.b16 %v455
        %v861 = vunpack.c.l.b16 %v456
        %v862 = vunpack.c.h.b16 %v456
        %v863 = vunpack.c.l.b16 %v457
        %v864 = vunpack.c.h.b16 %v457
        %v865 = vunpack.c.l.b16 %v458
        %v866 = vunpack.c.h.b16 %v458
        %v867 = vunpack.c.l.b16 %v459
        %v868 = vunpack.c.h.b16 %v459
        %v869 = vunpack.c.l.b16 %v460
        %v870 = vunpack.c.h.b16 %v460
        %v871 = vunpack.c.l.b16 %v461
        %v872 = vunpack.c.h.b16 %v461
        %v873 = vunpack.c.l.b16 %v462
        %v874 = vunpack.c.h.b16 %v462
        %v875 = vunpack.c.l.b16 %v463
        %v876 = vunpack.c.h.b16 %v463
        %v877 = vunpack.c.l.b16 %v464
        %v878 = vunpack.c.h.b16 %v464
        %v879 = vunpack.c.l.b16 %v465
        %v880 = vunpack.c.h.b16 %v465
        %v881 = vunpack.c.l.b16 %v466
        %v882 = vunpack.c.h.b16 %v466
        %v883 = vunpack.c.l.b16 %v467
        %v884 = vunpack.c.h.b16 %v467
        %v885 = vunpack.c.l.b16 %v468
        %v886 = vunpack.c.h.b16 %v468
        %v887 = vunpack.c.l.b16 %v469
        %v888 = vunpack.c.h.b16 %v469
        %v889 = vunpack.c.l.b16 %v470
        %v890 = vunpack.c.h.b16 %v470
        %v891 = vunpack.c.l.b16 %v471
        %v892 = vunpack.c.h.b16 %v471
        %v893 = vunpack.c.l.b16 %v472
        %v894 = vunpack.c.h.b16 %v472
        %v895 = vunpack.c.l.b16 %v473
        %v896 = vunpack.c.h.b16 %v473
        %v897 = vunpack.c.l.b16 %v474
        %v898 = vunpack.c.h.b16 %v474
        %v899 = vunpack.c.l.b16 %v475
        %v900 = vunpack.c.h.b16 %v475
        %v901 = vunpack.c.l.b16 %v476
        %v902 = vunpack.c.h.b16 %v476
        %v903 = vunpack.c.l.b16 %v477
        %v904 = vunpack.c.h.b16 %v477
        %v905 = vunpack.c.l.b16 %v478
        %v906 = vunpack.c.h.b16 %v478
        %v907 = vunpack.c.l.b16 %v479
        %v908 = vunpack.c.h.b16 %v479
        %v909 = vunpack.c.l.b16 %v480
        %v910 = vunpack.c.h.b16 %v480
        %v911 = vunpack.c.l.b16 %v481
        %v912 = vunpack.c.h.b16 %v481
        %v913 = vunpack.c.l.b16 %v482
        %v914 = vunpack.c.h.b16 %v482
        %v915 = vunpack.c.l.b16 %v483
        %v916 = vunpack.c.h.b16 %v483
        %v917 = vunpack.c.l.b16 %v484
        %v918 = vunpack.c.h.b16 %v484
        %v919 = vunpack.c.l.b16 %v485
        %v920 = vunpack.c.h.b16 %v485
        %v921 = vunpack.c.l.b16 %v486
        %v922 = vunpack.c.h.b16 %v486
        %v923 = vunpack.c.l.b16 %v487
        %v924 = vunpack.c.h.b16 %v487
        %v925 = vunpack.c.l.b16 %v488
        %v926 = vunpack.c.h.b16 %v488
        %v927 = vunpack.c.l.b16 %v489
        %v928 = vunpack.c.h.b16 %v489
        %v929 = vunpack.c.l.b16 %v490
        %v930 = vunpack.c.h.b16 %v490
        %v931 = vunpack.c.l.b16 %v491
        %v932 = vunpack.c.h.b16 %v491
        %v933 = vunpack.c.l.b16 %v492
        %v934 = vunpack.c.h.b16 %v492
        %v935 = vunpack.c.l.b16 %v493
        %v936 = vunpack.c.h.b16 %v493
        %v937 = vunpack.c.l.b16 %v494
        %v938 = vunpack.c.h.b16 %v494
        %v939 = vunpack.c.l.b16 %v495
        %v940 = vunpack.c.h.b16 %v495
        %v941 = vunpack.c.l.b16 %v496
        %v942 = vunpack.c.h.b16 %v496
        %v943 = vunpack.c.l.b16 %v497
        %v944 = vunpack.c.h.b16 %v497
        %v945 = vunpack.c.l.b16 %v498
        %v946 = vunpack.c.h.b16 %v498
        %v947 = vunpack.c.l.b16 %v499
        %v948 = vunpack.c.h.b16 %v499
        %v949 = vunpack.c.l.b16 %v500
        %v950 = vunpack.c.h.b16 %v500
        %v951 = vunpack.c.l.b16 %v501
        %v952 = vunpack.c.h.b16 %v501
        %v953 = vunpack.c.l.b16 %v502
        %v954 = vunpack.c.h.b16 %v502
        %v955 = vunpack.c.l.b16 %v503
        %v956 = vunpack.c.h.b16 %v503
        %v957 = vunpack.c.l.b16 %v504
        %v958 = vunpack.c.h.b16 %v504
        %v959 = vunpack.c.l.b16 %v505
        %v960 = vunpack.c.h.b16 %v505
        %v961 = vunpack.c.l.b16 %v506
        %v962 = vunpack.c.h.b16 %v506
        %v963 = vunpack.c.l.b16 %v507
        %v964 = vunpack.c.h.b16 %v507
        %v965 = vunpack.c.l.b16 %v508
        %v966 = vunpack.c.h.b16 %v508
        %v967 = vunpack.c.l.b16 %v509
        %v968 = vunpack.c.h.b16 %v509
        %v969 = vunpack.c.l.b16 %v510
        %v970 = vunpack.c.h.b16 %v510
        %v971 = vunpack.c.l.b16 %v511
        %v972 = vunpack.c.h.b16 %v511
        %v973 = vunpack.c.l.b16 %v512
        %v974 = vunpack.c.h.b16 %v512
        %v975 = vunpack.c.l.b16 %v513
        %v976 = vunpack.c.h.b16 %v513
        %v977 = vunpack.c.l.b16 %v514
        %v978 = vunpack.c.h.b16 %v514
        %v979 = vunpack.c.l.b16 %v515
        %v980 = vunpack.c.h.b16 %v515
        %v981 = vunpack.c.l.b16 %v516
        %v982 = vunpack.c.h.b16 %v516
        %v983 = vunpack.c.l.b16 %v517
        %v984 = vunpack.c.h.b16 %v517
        %v985 = vunpack.c.l.b16 %v518
        %v986 = vunpack.c.h.b16 %v518
        %v987 = vunpack.c.l.b16 %v519
        %v988 = vunpack.c.h.b16 %v519
        %v989 = vunpack.c.l.b16 %v520
        %v990 = vunpack.c.h.b16 %v520
        %v991 = vunpack.c.l.b16 %v521
        %v992 = vunpack.c.h.b16 %v521
        %v993 = vunpack.c.l.b16 %v522
        %v994 = vunpack.c.h.b16 %v522
        %v995 = vunpack.c.l.b16 %v523
        %v996 = vunpack.c.h.b16 %v523
        %v997 = vunpack.c.l.b16 %v524
        %v998 = vunpack.c.h.b16 %v524
        %v999 = vpack.c.b16 %v747, %v743
        %v1000 = vpack.c.b16 %v748, %v744
        %v1001 = vpack.c.b16 %v749, %v745
        %v1002 = vpack.c.b16 %v750, %v746
        %v1003 = vpack.c.b16 %v755, %v751
        %v1004 = vpack.c.b16 %v756, %v752
        %v1005 = vpack.c.b16 %v757, %v753
        %v1006 = vpack.c.b16 %v758, %v754
        %v1007 = vpack.c.b16 %v763, %v759
        %v1008 = vpack.c.b16 %v764, %v760
        %v1009 = vpack.c.b16 %v765, %v761
        %v1010 = vpack.c.b16 %v766, %v762
        %v1011 = vpack.c.b16 %v771, %v767
        %v1012 = vpack.c.b16 %v772, %v768
        %v1013 = vpack.c.b16 %v773, %v769
        %v1014 = vpack.c.b16 %v774, %v770
        %v1015 = vpack.c.b16 %v779, %v775
        %v1016 = vpack.c.b16 %v780, %v776
        %v1017 = vpack.c.b16 %v781, %v777
        %v1018 = vpack.c.b16 %v782, %v778
        %v1019 = vpack.c.b16 %v787, %v783
        %v1020 = vpack.c.b16 %v788, %v784
        %v1021 = vpack.c.b16 %v789, %v785
        %v1022 = vpack.c.b16 %v790, %v786
        %v1023 = vpack.c.b16 %v795, %v791
        %v1024 = vpack.c.b16 %v796, %v792
        %v1025 = vpack.c.b16 %v797, %v793
        %v1026 = vpack.c.b16 %v798, %v794
        %v1027 = vpack.c.b16 %v803, %v799
        %v1028 = vpack.c.b16 %v804, %v800
        %v1029 = vpack.c.b16 %v805, %v801
        %v1030 = vpack.c.b16 %v806, %v802
        %v1031 = vpack.c.b16 %v811, %v807
        %v1032 = vpack.c.b16 %v812, %v808
        %v1033 = vpack.c.b16 %v813, %v809
        %v1034 = vpack.c.b16 %v814, %v810
        %v1035 = vpack.c.b16 %v819, %v815
        %v1036 = vpack.c.b16 %v820, %v816
        %v1037 = vpack.c.b16 %v821, %v817
        %v1038 = vpack.c.b16 %v822, %v818
        %v1039 = vpack.c.b16 %v827, %v823
        %v1040 = vpack.c.b16 %v828, %v824
        %v1041 = vpack.c.b16 %v829, %v825
        %v1042 = vpack.c.b16 %v830, %v826
        %v1043 = vpack.c.b16 %v835, %v831
        %v1044 = vpack.c.b16 %v836, %v832
        %v1045 = vpack.c.b16 %v837, %v833
        %v1046 = vpack.c.b16 %v838, %v834
        %v1047 = vpack.c.b16 %v843, %v839
        %v1048 = vpack.c.b16 %v844, %v840
        %v1049 = vpack.c.b16 %v845, %v841
        %v1050 = vpack.c.b16 %v846, %v842
        %v1051 = vpack.c.b16 %v851, %v847
        %v1052 = vpack.c.b16 %v852, %v848
        %v1053 = vpack.c.b16 %v853, %v849
        %v1054 = vpack.c.b16 %v854, %v850
        %v1055 = vpack.c.b16 %v859, %v855
        %v1056 = vpack.c.b16 %v860, %v856
        %v1057 = vpack.c.b16 %v861, %v857
        %v1058 = vpack.c.b16 %v862, %v858
        %v1059 = vpack.c.b16 %v867, %v863
        %v1060 = vpack.c.b16 %v868, %v864
        %v1061 = vpack.c.b16 %v869, %v865
        %v1062 = vpack.c.b16 %v870, %v866
        %v1063 = vpack.c.b16 %v875, %v871
        %v1064 = vpack.c.b16 %v876, %v872
        %v1065 = vpack.c.b16 %v877, %v873
        %v1066 = vpack.c.b16 %v878, %v874
        %v1067 = vpack.c.b16 %v883, %v879
        %v1068 = vpack.c.b16 %v884, %v880
        %v1069 = vpack.c.b16 %v885, %v881
        %v1070 = vpack.c.b16 %v886, %v882
        %v1071 = vpack.c.b16 %v891, %v887
        %v1072 = vpack.c.b16 %v892, %v888
        %v1073 = vpack.c.b16 %v893, %v889
        %v1074 = vpack.c.b16 %v894, %v890
        %v1075 = vpack.c.b16 %v899, %v895
        %v1076 = vpack.c.b16 %v900, %v896
        %v1077 = vpack.c.b16 %v901, %v897
        %v1078 = vpack.c.b16 %v902, %v898
        %v1079 = vpack.c.b16 %v907, %v903
        %v1080 = vpack.c.b16 %v908, %v904
        %v1081 = vpack.c.b16 %v909, %v905
        %v1082 = vpack.c.b16 %v910, %v906
        %v1083 = vpack.c.b16 %v915, %v911
        %v1084 = vpack.c.b16 %v916, %v912
        %v1085 = vpack.c.b16 %v917, %v913
        %v1086 = vpack.c.b16 %v918, %v914
        %v1087 = vpack.c.b16 %v923, %v919
        %v1088 = vpack.c.b16 %v924, %v920
        %v1089 = vpack.c.b16 %v925, %v921
        %v1090 = vpack.c.b16 %v926, %v922
        %v1091 = vpack.c.b16 %v931, %v927
        %v1092 = vpack.c.b16 %v932, %v928
        %v1093 = vpack.c.b16 %v933, %v929
        %v1094 = vpack.c.b16 %v934, %v930
        %v1095 = vpack.c.b16 %v939, %v935
        %v1096 = vpack.c.b16 %v940, %v936
        %v1097 = vpack.c.b16 %v941, %v937
        %v1098 = vpack.c.b16 %v942, %v938
        %v1099 = vpack.c.b16 %v947, %v943
        %v1100 = vpack.c.b16 %v948, %v944
        %v1101 = vpack.c.b16 %v949, %v945
        %v1102 = vpack.c.b16 %v950, %v946
        %v1103 = vpack.c.b16 %v955, %v951
        %v1104 = vpack.c.b16 %v956, %v952
        %v1105 = vpack.c.b16 %v957, %v953
        %v1106 = vpack.c.b16 %v958, %v954
        %v1107 = vpack.c.b16 %v963, %v959
        %v1108 = vpack.c.b16 %v964, %v960
        %v1109 = vpack.c.b16 %v965, %v961
        %v1110 = vpack.c.b16 %v966, %v962
        %v1111 = vpack.c.b16 %v971, %v967
        %v1112 = vpack.c.b16 %v972, %v968
        %v1113 = vpack.c.b16 %v973, %v969
        %v1114 = vpack.c.b16 %v974, %v970
        %v1115 = vpack.c.b16 %v979, %v975
        %v1116 = vpack.c.b16 %v980, %v976
        %v1117 = vpack.c.b16 %v981, %v977
        %v1118 = vpack.c.b16 %v982, %v978
        %v1119 = vpack.c.b16 %v987, %v983
        %v1120 = vpack.c.b16 %v988, %v984
        %v1121 = vpack.c.b16 %v989, %v985
        %v1122 = vpack.c.b16 %v990, %v986
        %v1123 = vpack.c.b16 %v995, %v991
        %v1124 = vpack.c.b16 %v996, %v992
        %v1125 = vpack.c.b16 %v997, %v993
        %v1126 = vpack.c.b16 %v998, %v994
        %1255 = vmatpush.bf16.msra.mxu0 %v1027
        %1256 = vmatpush.bf16.msra.mxu0 %v1023
        %1257 = vmatpush.bf16.msra.mxu0 %v1019
        %1258 = vmatpush.bf16.msra.mxu0 %v1015
        %1259 = vmatpush.bf16.msra.mxu0 %v1011
        %1260 = vmatpush.bf16.msra.mxu0 %v1007
        %1261 = vmatpush.bf16.msra.mxu0 %v1003
        %1262 = vmatpush.bf16.msra.mxu0 %v999
        %1263 = vmatmul.bf16.gmra.mxu0 %v583
        %v1264 = vpop.f32.mrf.mxu0
        %v1265 = vadd.f32 %v527, %v1264
        %v1266 = vpop.f32.mrf.mxu0
        %v1267 = vadd.f32 %v527, %v1266
        %1268 = vmatmul.bf16.gmra.mxu0 %v587
        %v1269 = vpop.f32.mrf.mxu0
        %v1270 = vadd.f32 %v527, %v1269
        %v1271 = vpop.f32.mrf.mxu0
        %v1272 = vadd.f32 %v527, %v1271
        %1273 = vmatmul.bf16.gmra.mxu0 %v591
        %v1274 = vpop.f32.mrf.mxu0
        %v1275 = vadd.f32 %v527, %v1274
        %v1276 = vpop.f32.mrf.mxu0
        %v1277 = vadd.f32 %v527, %v1276
        %1278 = vmatmul.bf16.gmra.mxu0 %v595
        %v1279 = vpop.f32.mrf.mxu0
        %v1280 = vadd.f32 %v527, %v1279
        %v1281 = vpop.f32.mrf.mxu0
        %v1282 = vadd.f32 %v527, %v1281
        %1283 = vdwg.mxu0
        %1284 = vmatpush.bf16.msra.mxu0 %v1059
        %1285 = vmatpush.bf16.msra.mxu0 %v1055
        %1286 = vmatpush.bf16.msra.mxu0 %v1051
        %1287 = vmatpush.bf16.msra.mxu0 %v1047
        %1288 = vmatpush.bf16.msra.mxu0 %v1043
        %1289 = vmatpush.bf16.msra.mxu0 %v1039
        %1290 = vmatpush.bf16.msra.mxu0 %v1035
        %1291 = vmatpush.bf16.msra.mxu0 %v1031
        %1292 = vmatmul.bf16.gmra.mxu0 %v584
        %v1293 = vpop.f32.mrf.mxu0
        %v1294 = vadd.f32 %v1265, %v1293
        %v1295 = vpop.f32.mrf.mxu0
        %v1296 = vadd.f32 %v1267, %v1295
        %1297 = vmatmul.bf16.gmra.mxu0 %v588
        %v1298 = vpop.f32.mrf.mxu0
        %v1299 = vadd.f32 %v1270, %v1298
        %v1300 = vpop.f32.mrf.mxu0
        %v1301 = vadd.f32 %v1272, %v1300
        %1302 = vmatmul.bf16.gmra.mxu0 %v592
        %v1303 = vpop.f32.mrf.mxu0
        %v1304 = vadd.f32 %v1275, %v1303
        %v1305 = vpop.f32.mrf.mxu0
        %v1306 = vadd.f32 %v1277, %v1305
        %1307 = vmatmul.bf16.gmra.mxu0 %v596
        %v1308 = vpop.f32.mrf.mxu0
        %v1309 = vadd.f32 %v1280, %v1308
        %v1310 = vpop.f32.mrf.mxu0
        %v1311 = vadd.f32 %v1282, %v1310
        %1312 = vdwg.mxu0
        %1313 = vmatpush.bf16.msra.mxu0 %v1091
        %1314 = vmatpush.bf16.msra.mxu0 %v1087
        %1315 = vmatpush.bf16.msra.mxu0 %v1083
        %1316 = vmatpush.bf16.msra.mxu0 %v1079
        %1317 = vmatpush.bf16.msra.mxu0 %v1075
        %1318 = vmatpush.bf16.msra.mxu0 %v1071
        %1319 = vmatpush.bf16.msra.mxu0 %v1067
        %1320 = vmatpush.bf16.msra.mxu0 %v1063
        %1321 = vmatmul.bf16.gmra.mxu0 %v585
        %v1322 = vpop.f32.mrf.mxu0
        %v1323 = vadd.f32 %v1294, %v1322
        %v1324 = vpop.f32.mrf.mxu0
        %v1325 = vadd.f32 %v1296, %v1324
        %1326 = vmatmul.bf16.gmra.mxu0 %v589
        %v1327 = vpop.f32.mrf.mxu0
        %v1328 = vadd.f32 %v1299, %v1327
        %v1329 = vpop.f32.mrf.mxu0
        %v1330 = vadd.f32 %v1301, %v1329
        %1331 = vmatmul.bf16.gmra.mxu0 %v593
        %v1332 = vpop.f32.mrf.mxu0
        %v1333 = vadd.f32 %v1304, %v1332
        %v1334 = vpop.f32.mrf.mxu0
        %v1335 = vadd.f32 %v1306, %v1334
        %1336 = vmatmul.bf16.gmra.mxu0 %v597
        %v1337 = vpop.f32.mrf.mxu0
        %v1338 = vadd.f32 %v1309, %v1337
        %v1339 = vpop.f32.mrf.mxu0
        %v1340 = vadd.f32 %v1311, %v1339
        %1341 = vdwg.mxu0
        %1342 = vmatpush.bf16.msra.mxu0 %v1123
        %1343 = vmatpush.bf16.msra.mxu0 %v1119
        %1344 = vmatpush.bf16.msra.mxu0 %v1115
        %1345 = vmatpush.bf16.msra.mxu0 %v1111
        %1346 = vmatpush.bf16.msra.mxu0 %v1107
        %1347 = vmatpush.bf16.msra.mxu0 %v1103
        %1348 = vmatpush.bf16.msra.mxu0 %v1099
        %1349 = vmatpush.bf16.msra.mxu0 %v1095
        %1350 = vmatmul.bf16.gmra.mxu0 %v586
        %v1351 = vpop.f32.mrf.mxu0
        %v1352 = vadd.f32 %v1323, %v1351
        %v1353 = vpop.f32.mrf.mxu0
        %v1354 = vadd.f32 %v1325, %v1353
        %1355 = vmatmul.bf16.gmra.mxu0 %v590
        %v1356 = vpop.f32.mrf.mxu0
        %v1357 = vadd.f32 %v1328, %v1356
        %v1358 = vpop.f32.mrf.mxu0
        %v1359 = vadd.f32 %v1330, %v1358
        %1360 = vmatmul.bf16.gmra.mxu0 %v594
        %v1361 = vpop.f32.mrf.mxu0
        %v1362 = vadd.f32 %v1333, %v1361
        %v1363 = vpop.f32.mrf.mxu0
        %v1364 = vadd.f32 %v1335, %v1363
        %1365 = vmatmul.bf16.gmra.mxu0 %v598
        %v1366 = vpop.f32.mrf.mxu0
        %v1367 = vadd.f32 %v1338, %v1366
        %v1368 = vpop.f32.mrf.mxu0
        %v1369 = vadd.f32 %v1340, %v1368
        %1370 = vdwg.mxu0
        %1371 = vmatpush.bf16.msra.mxu0 %v1028
        %1372 = vmatpush.bf16.msra.mxu0 %v1024
        %1373 = vmatpush.bf16.msra.mxu0 %v1020
        %1374 = vmatpush.bf16.msra.mxu0 %v1016
        %1375 = vmatpush.bf16.msra.mxu0 %v1012
        %1376 = vmatpush.bf16.msra.mxu0 %v1008
        %1377 = vmatpush.bf16.msra.mxu0 %v1004
        %1378 = vmatpush.bf16.msra.mxu0 %v1000
        %1379 = vmatmul.bf16.gmra.mxu0 %v583
        %v1380 = vpop.f32.mrf.mxu0
        %v1381 = vadd.f32 %v528, %v1380
        %v1382 = vpop.f32.mrf.mxu0
        %v1383 = vadd.f32 %v528, %v1382
        %1384 = vmatmul.bf16.gmra.mxu0 %v587
        %v1385 = vpop.f32.mrf.mxu0
        %v1386 = vadd.f32 %v528, %v1385
        %v1387 = vpop.f32.mrf.mxu0
        %v1388 = vadd.f32 %v528, %v1387
        %1389 = vmatmul.bf16.gmra.mxu0 %v591
        %v1390 = vpop.f32.mrf.mxu0
        %v1391 = vadd.f32 %v528, %v1390
        %v1392 = vpop.f32.mrf.mxu0
        %v1393 = vadd.f32 %v528, %v1392
        %1394 = vmatmul.bf16.gmra.mxu0 %v595
        %v1395 = vpop.f32.mrf.mxu0
        %v1396 = vadd.f32 %v528, %v1395
        %v1397 = vpop.f32.mrf.mxu0
        %v1398 = vadd.f32 %v528, %v1397
        %1399 = vdwg.mxu0
        %1400 = vmatpush.bf16.msra.mxu0 %v1060
        %1401 = vmatpush.bf16.msra.mxu0 %v1056
        %1402 = vmatpush.bf16.msra.mxu0 %v1052
        %1403 = vmatpush.bf16.msra.mxu0 %v1048
        %1404 = vmatpush.bf16.msra.mxu0 %v1044
        %1405 = vmatpush.bf16.msra.mxu0 %v1040
        %1406 = vmatpush.bf16.msra.mxu0 %v1036
        %1407 = vmatpush.bf16.msra.mxu0 %v1032
        %1408 = vmatmul.bf16.gmra.mxu0 %v584
        %v1409 = vpop.f32.mrf.mxu0
        %v1410 = vadd.f32 %v1381, %v1409
        %v1411 = vpop.f32.mrf.mxu0
        %v1412 = vadd.f32 %v1383, %v1411
        %1413 = vmatmul.bf16.gmra.mxu0 %v588
        %v1414 = vpop.f32.mrf.mxu0
        %v1415 = vadd.f32 %v1386, %v1414
        %v1416 = vpop.f32.mrf.mxu0
        %v1417 = vadd.f32 %v1388, %v1416
        %1418 = vmatmul.bf16.gmra.mxu0 %v592
        %v1419 = vpop.f32.mrf.mxu0
        %v1420 = vadd.f32 %v1391, %v1419
        %v1421 = vpop.f32.mrf.mxu0
        %v1422 = vadd.f32 %v1393, %v1421
        %1423 = vmatmul.bf16.gmra.mxu0 %v596
        %v1424 = vpop.f32.mrf.mxu0
        %v1425 = vadd.f32 %v1396, %v1424
        %v1426 = vpop.f32.mrf.mxu0
        %v1427 = vadd.f32 %v1398, %v1426
        %1428 = vdwg.mxu0
        %1429 = vmatpush.bf16.msra.mxu0 %v1092
        %1430 = vmatpush.bf16.msra.mxu0 %v1088
        %1431 = vmatpush.bf16.msra.mxu0 %v1084
        %1432 = vmatpush.bf16.msra.mxu0 %v1080
        %1433 = vmatpush.bf16.msra.mxu0 %v1076
        %1434 = vmatpush.bf16.msra.mxu0 %v1072
        %1435 = vmatpush.bf16.msra.mxu0 %v1068
        %1436 = vmatpush.bf16.msra.mxu0 %v1064
        %1437 = vmatmul.bf16.gmra.mxu0 %v585
        %v1438 = vpop.f32.mrf.mxu0
        %v1439 = vadd.f32 %v1410, %v1438
        %v1440 = vpop.f32.mrf.mxu0
        %v1441 = vadd.f32 %v1412, %v1440
        %1442 = vmatmul.bf16.gmra.mxu0 %v589
        %v1443 = vpop.f32.mrf.mxu0
        %v1444 = vadd.f32 %v1415, %v1443
        %v1445 = vpop.f32.mrf.mxu0
        %v1446 = vadd.f32 %v1417, %v1445
        %1447 = vmatmul.bf16.gmra.mxu0 %v593
        %v1448 = vpop.f32.mrf.mxu0
        %v1449 = vadd.f32 %v1420, %v1448
        %v1450 = vpop.f32.mrf.mxu0
        %v1451 = vadd.f32 %v1422, %v1450
        %1452 = vmatmul.bf16.gmra.mxu0 %v597
        %v1453 = vpop.f32.mrf.mxu0
        %v1454 = vadd.f32 %v1425, %v1453
        %v1455 = vpop.f32.mrf.mxu0
        %v1456 = vadd.f32 %v1427, %v1455
        %1457 = vdwg.mxu0
        %1458 = vmatpush.bf16.msra.mxu0 %v1124
        %1459 = vmatpush.bf16.msra.mxu0 %v1120
        %1460 = vmatpush.bf16.msra.mxu0 %v1116
        %1461 = vmatpush.bf16.msra.mxu0 %v1112
        %1462 = vmatpush.bf16.msra.mxu0 %v1108
        %1463 = vmatpush.bf16.msra.mxu0 %v1104
        %1464 = vmatpush.bf16.msra.mxu0 %v1100
        %1465 = vmatpush.bf16.msra.mxu0 %v1096
        %1466 = vmatmul.bf16.gmra.mxu0 %v586
        %v1467 = vpop.f32.mrf.mxu0
        %v1468 = vadd.f32 %v1439, %v1467
        %v1469 = vpop.f32.mrf.mxu0
        %v1470 = vadd.f32 %v1441, %v1469
        %1471 = vmatmul.bf16.gmra.mxu0 %v590
        %v1472 = vpop.f32.mrf.mxu0
        %v1473 = vadd.f32 %v1444, %v1472
        %v1474 = vpop.f32.mrf.mxu0
        %v1475 = vadd.f32 %v1446, %v1474
        %1476 = vmatmul.bf16.gmra.mxu0 %v594
        %v1477 = vpop.f32.mrf.mxu0
        %v1478 = vadd.f32 %v1449, %v1477
        %v1479 = vpop.f32.mrf.mxu0
        %v1480 = vadd.f32 %v1451, %v1479
        %1481 = vmatmul.bf16.gmra.mxu0 %v598
        %v1482 = vpop.f32.mrf.mxu0
        %v1483 = vadd.f32 %v1454, %v1482
        %v1484 = vpop.f32.mrf.mxu0
        %v1485 = vadd.f32 %v1456, %v1484
        %1486 = vdwg.mxu0
        %1487 = vmatpush.bf16.msra.mxu0 %v1029
        %1488 = vmatpush.bf16.msra.mxu0 %v1025
        %1489 = vmatpush.bf16.msra.mxu0 %v1021
        %1490 = vmatpush.bf16.msra.mxu0 %v1017
        %1491 = vmatpush.bf16.msra.mxu0 %v1013
        %1492 = vmatpush.bf16.msra.mxu0 %v1009
        %1493 = vmatpush.bf16.msra.mxu0 %v1005
        %1494 = vmatpush.bf16.msra.mxu0 %v1001
        %1495 = vmatmul.bf16.gmra.mxu0 %v583
        %v1496 = vpop.f32.mrf.mxu0
        %v1497 = vadd.f32 %v529, %v1496
        %v1498 = vpop.f32.mrf.mxu0
        %v1499 = vadd.f32 %v529, %v1498
        %1500 = vmatmul.bf16.gmra.mxu0 %v587
        %v1501 = vpop.f32.mrf.mxu0
        %v1502 = vadd.f32 %v529, %v1501
        %v1503 = vpop.f32.mrf.mxu0
        %v1504 = vadd.f32 %v529, %v1503
        %1505 = vmatmul.bf16.gmra.mxu0 %v591
        %v1506 = vpop.f32.mrf.mxu0
        %v1507 = vadd.f32 %v529, %v1506
        %v1508 = vpop.f32.mrf.mxu0
        %v1509 = vadd.f32 %v529, %v1508
        %1510 = vmatmul.bf16.gmra.mxu0 %v595
        %v1511 = vpop.f32.mrf.mxu0
        %v1512 = vadd.f32 %v529, %v1511
        %v1513 = vpop.f32.mrf.mxu0
        %v1514 = vadd.f32 %v529, %v1513
        %1515 = vdwg.mxu0
        %1516 = vmatpush.bf16.msra.mxu0 %v1061
        %1517 = vmatpush.bf16.msra.mxu0 %v1057
        %1518 = vmatpush.bf16.msra.mxu0 %v1053
        %1519 = vmatpush.bf16.msra.mxu0 %v1049
        %1520 = vmatpush.bf16.msra.mxu0 %v1045
        %1521 = vmatpush.bf16.msra.mxu0 %v1041
        %1522 = vmatpush.bf16.msra.mxu0 %v1037
        %1523 = vmatpush.bf16.msra.mxu0 %v1033
        %1524 = vmatmul.bf16.gmra.mxu0 %v584
        %v1525 = vpop.f32.mrf.mxu0
        %v1526 = vadd.f32 %v1497, %v1525
        %v1527 = vpop.f32.mrf.mxu0
        %v1528 = vadd.f32 %v1499, %v1527
        %1529 = vmatmul.bf16.gmra.mxu0 %v588
        %v1530 = vpop.f32.mrf.mxu0
        %v1531 = vadd.f32 %v1502, %v1530
        %v1532 = vpop.f32.mrf.mxu0
        %v1533 = vadd.f32 %v1504, %v1532
        %1534 = vmatmul.bf16.gmra.mxu0 %v592
        %v1535 = vpop.f32.mrf.mxu0
        %v1536 = vadd.f32 %v1507, %v1535
        %v1537 = vpop.f32.mrf.mxu0
        %v1538 = vadd.f32 %v1509, %v1537
        %1539 = vmatmul.bf16.gmra.mxu0 %v596
        %v1540 = vpop.f32.mrf.mxu0
        %v1541 = vadd.f32 %v1512, %v1540
        %v1542 = vpop.f32.mrf.mxu0
        %v1543 = vadd.f32 %v1514, %v1542
        %1544 = vdwg.mxu0
        %1545 = vmatpush.bf16.msra.mxu0 %v1093
        %1546 = vmatpush.bf16.msra.mxu0 %v1089
        %1547 = vmatpush.bf16.msra.mxu0 %v1085
        %1548 = vmatpush.bf16.msra.mxu0 %v1081
        %1549 = vmatpush.bf16.msra.mxu0 %v1077
        %1550 = vmatpush.bf16.msra.mxu0 %v1073
        %1551 = vmatpush.bf16.msra.mxu0 %v1069
        %1552 = vmatpush.bf16.msra.mxu0 %v1065
        %1553 = vmatmul.bf16.gmra.mxu0 %v585
        %v1554 = vpop.f32.mrf.mxu0
        %v1555 = vadd.f32 %v1526, %v1554
        %v1556 = vpop.f32.mrf.mxu0
        %v1557 = vadd.f32 %v1528, %v1556
        %1558 = vmatmul.bf16.gmra.mxu0 %v589
        %v1559 = vpop.f32.mrf.mxu0
        %v1560 = vadd.f32 %v1531, %v1559
        %v1561 = vpop.f32.mrf.mxu0
        %v1562 = vadd.f32 %v1533, %v1561
        %1563 = vmatmul.bf16.gmra.mxu0 %v593
        %v1564 = vpop.f32.mrf.mxu0
        %v1565 = vadd.f32 %v1536, %v1564
        %v1566 = vpop.f32.mrf.mxu0
        %v1567 = vadd.f32 %v1538, %v1566
        %1568 = vmatmul.bf16.gmra.mxu0 %v597
        %v1569 = vpop.f32.mrf.mxu0
        %v1570 = vadd.f32 %v1541, %v1569
        %v1571 = vpop.f32.mrf.mxu0
        %v1572 = vadd.f32 %v1543, %v1571
        %1573 = vdwg.mxu0
        %1574 = vmatpush.bf16.msra.mxu0 %v1125
        %1575 = vmatpush.bf16.msra.mxu0 %v1121
        %1576 = vmatpush.bf16.msra.mxu0 %v1117
        %1577 = vmatpush.bf16.msra.mxu0 %v1113
        %1578 = vmatpush.bf16.msra.mxu0 %v1109
        %1579 = vmatpush.bf16.msra.mxu0 %v1105
        %1580 = vmatpush.bf16.msra.mxu0 %v1101
        %1581 = vmatpush.bf16.msra.mxu0 %v1097
        %1582 = vmatmul.bf16.gmra.mxu0 %v586
        %v1583 = vpop.f32.mrf.mxu0
        %v1584 = vadd.f32 %v1555, %v1583
        %v1585 = vpop.f32.mrf.mxu0
        %v1586 = vadd.f32 %v1557, %v1585
        %1587 = vmatmul.bf16.gmra.mxu0 %v590
        %v1588 = vpop.f32.mrf.mxu0
        %v1589 = vadd.f32 %v1560, %v1588
        %v1590 = vpop.f32.mrf.mxu0
        %v1591 = vadd.f32 %v1562, %v1590
        %1592 = vmatmul.bf16.gmra.mxu0 %v594
        %v1593 = vpop.f32.mrf.mxu0
        %v1594 = vadd.f32 %v1565, %v1593
        %v1595 = vpop.f32.mrf.mxu0
        %v1596 = vadd.f32 %v1567, %v1595
        %1597 = vmatmul.bf16.gmra.mxu0 %v598
        %v1598 = vpop.f32.mrf.mxu0
        %v1599 = vadd.f32 %v1570, %v1598
        %v1600 = vpop.f32.mrf.mxu0
        %v1601 = vadd.f32 %v1572, %v1600
        %1602 = vdwg.mxu0
        %1603 = vmatpush.bf16.msra.mxu0 %v1030
        %1604 = vmatpush.bf16.msra.mxu0 %v1026
        %1605 = vmatpush.bf16.msra.mxu0 %v1022
        %1606 = vmatpush.bf16.msra.mxu0 %v1018
        %1607 = vmatpush.bf16.msra.mxu0 %v1014
        %1608 = vmatpush.bf16.msra.mxu0 %v1010
        %1609 = vmatpush.bf16.msra.mxu0 %v1006
        %1610 = vmatpush.bf16.msra.mxu0 %v1002
        %1611 = vmatmul.bf16.gmra.mxu0 %v583
        %v1612 = vpop.f32.mrf.mxu0
        %v1613 = vadd.f32 %v530, %v1612
        %v1614 = vpop.f32.mrf.mxu0
        %v1615 = vadd.f32 %v530, %v1614
        %1616 = vmatmul.bf16.gmra.mxu0 %v587
        %v1617 = vpop.f32.mrf.mxu0
        %v1618 = vadd.f32 %v530, %v1617
        %v1619 = vpop.f32.mrf.mxu0
        %v1620 = vadd.f32 %v530, %v1619
        %1621 = vmatmul.bf16.gmra.mxu0 %v591
        %v1622 = vpop.f32.mrf.mxu0
        %v1623 = vadd.f32 %v530, %v1622
        %v1624 = vpop.f32.mrf.mxu0
        %v1625 = vadd.f32 %v530, %v1624
        %1626 = vmatmul.bf16.gmra.mxu0 %v595
        %v1627 = vpop.f32.mrf.mxu0
        %v1628 = vadd.f32 %v530, %v1627
        %v1629 = vpop.f32.mrf.mxu0
        %v1630 = vadd.f32 %v530, %v1629
        %1631 = vdwg.mxu0
        %1632 = vmatpush.bf16.msra.mxu0 %v1062
        %1633 = vmatpush.bf16.msra.mxu0 %v1058
        %1634 = vmatpush.bf16.msra.mxu0 %v1054
        %1635 = vmatpush.bf16.msra.mxu0 %v1050
        %1636 = vmatpush.bf16.msra.mxu0 %v1046
        %1637 = vmatpush.bf16.msra.mxu0 %v1042
        %1638 = vmatpush.bf16.msra.mxu0 %v1038
        %1639 = vmatpush.bf16.msra.mxu0 %v1034
        %1640 = vmatmul.bf16.gmra.mxu0 %v584
        %v1641 = vpop.f32.mrf.mxu0
        %v1642 = vadd.f32 %v1613, %v1641
        %v1643 = vpop.f32.mrf.mxu0
        %v1644 = vadd.f32 %v1615, %v1643
        %1645 = vmatmul.bf16.gmra.mxu0 %v588
        %v1646 = vpop.f32.mrf.mxu0
        %v1647 = vadd.f32 %v1618, %v1646
        %v1648 = vpop.f32.mrf.mxu0
        %v1649 = vadd.f32 %v1620, %v1648
        %1650 = vmatmul.bf16.gmra.mxu0 %v592
        %v1651 = vpop.f32.mrf.mxu0
        %v1652 = vadd.f32 %v1623, %v1651
        %v1653 = vpop.f32.mrf.mxu0
        %v1654 = vadd.f32 %v1625, %v1653
        %1655 = vmatmul.bf16.gmra.mxu0 %v596
        %v1656 = vpop.f32.mrf.mxu0
        %v1657 = vadd.f32 %v1628, %v1656
        %v1658 = vpop.f32.mrf.mxu0
        %v1659 = vadd.f32 %v1630, %v1658
        %1660 = vdwg.mxu0
        %1661 = vmatpush.bf16.msra.mxu0 %v1094
        %1662 = vmatpush.bf16.msra.mxu0 %v1090
        %1663 = vmatpush.bf16.msra.mxu0 %v1086
        %1664 = vmatpush.bf16.msra.mxu0 %v1082
        %1665 = vmatpush.bf16.msra.mxu0 %v1078
        %1666 = vmatpush.bf16.msra.mxu0 %v1074
        %1667 = vmatpush.bf16.msra.mxu0 %v1070
        %1668 = vmatpush.bf16.msra.mxu0 %v1066
        %1669 = vmatmul.bf16.gmra.mxu0 %v585
        %v1670 = vpop.f32.mrf.mxu0
        %v1671 = vadd.f32 %v1642, %v1670
        %v1672 = vpop.f32.mrf.mxu0
        %v1673 = vadd.f32 %v1644, %v1672
        %1674 = vmatmul.bf16.gmra.mxu0 %v589
        %v1675 = vpop.f32.mrf.mxu0
        %v1676 = vadd.f32 %v1647, %v1675
        %v1677 = vpop.f32.mrf.mxu0
        %v1678 = vadd.f32 %v1649, %v1677
        %1679 = vmatmul.bf16.gmra.mxu0 %v593
        %v1680 = vpop.f32.mrf.mxu0
        %v1681 = vadd.f32 %v1652, %v1680
        %v1682 = vpop.f32.mrf.mxu0
        %v1683 = vadd.f32 %v1654, %v1682
        %1684 = vmatmul.bf16.gmra.mxu0 %v597
        %v1685 = vpop.f32.mrf.mxu0
        %v1686 = vadd.f32 %v1657, %v1685
        %v1687 = vpop.f32.mrf.mxu0
        %v1688 = vadd.f32 %v1659, %v1687
        %1689 = vdwg.mxu0
        %1690 = vmatpush.bf16.msra.mxu0 %v1126
        %1691 = vmatpush.bf16.msra.mxu0 %v1122
        %1692 = vmatpush.bf16.msra.mxu0 %v1118
        %1693 = vmatpush.bf16.msra.mxu0 %v1114
        %1694 = vmatpush.bf16.msra.mxu0 %v1110
        %1695 = vmatpush.bf16.msra.mxu0 %v1106
        %1696 = vmatpush.bf16.msra.mxu0 %v1102
        %1697 = vmatpush.bf16.msra.mxu0 %v1098
        %1698 = vmatmul.bf16.gmra.mxu0 %v586
        %v1699 = vpop.f32.mrf.mxu0
        %v1700 = vadd.f32 %v1671, %v1699
        %v1701 = vpop.f32.mrf.mxu0
        %v1702 = vadd.f32 %v1673, %v1701
        %1703 = vmatmul.bf16.gmra.mxu0 %v590
        %v1704 = vpop.f32.mrf.mxu0
        %v1705 = vadd.f32 %v1676, %v1704
        %v1706 = vpop.f32.mrf.mxu0
        %v1707 = vadd.f32 %v1678, %v1706
        %1708 = vmatmul.bf16.gmra.mxu0 %v594
        %v1709 = vpop.f32.mrf.mxu0
        %v1710 = vadd.f32 %v1681, %v1709
        %v1711 = vpop.f32.mrf.mxu0
        %v1712 = vadd.f32 %v1683, %v1711
        %1713 = vmatmul.bf16.gmra.mxu0 %v598
        %v1714 = vpop.f32.mrf.mxu0
        %v1715 = vadd.f32 %v1686, %v1714
        %v1716 = vpop.f32.mrf.mxu0
        %v1717 = vadd.f32 %v1688, %v1716
        %1718 = vdwg.mxu0
        %v1719 = vmax.f32 %v1352, 0.0
        %v1720 = vmax.f32 %v1468, 0.0
        %v1721 = vmax.f32 %v1584, 0.0
        %v1722 = vmax.f32 %v1700, 0.0
        %v1723 = vmax.f32 %v1354, 0.0
        %v1724 = vmax.f32 %v1470, 0.0
        %v1725 = vmax.f32 %v1586, 0.0
        %v1726 = vmax.f32 %v1702, 0.0
        %v1727 = vmax.f32 %v1357, 0.0
        %v1728 = vmax.f32 %v1473, 0.0
        %v1729 = vmax.f32 %v1589, 0.0
        %v1730 = vmax.f32 %v1705, 0.0
        %v1731 = vmax.f32 %v1359, 0.0
        %v1732 = vmax.f32 %v1475, 0.0
        %v1733 = vmax.f32 %v1591, 0.0
        %v1734 = vmax.f32 %v1707, 0.0
        %v1735 = vmax.f32 %v1362, 0.0
        %v1736 = vmax.f32 %v1478, 0.0
        %v1737 = vmax.f32 %v1594, 0.0
        %v1738 = vmax.f32 %v1710, 0.0
        %v1739 = vmax.f32 %v1364, 0.0
        %v1740 = vmax.f32 %v1480, 0.0
        %v1741 = vmax.f32 %v1596, 0.0
        %v1742 = vmax.f32 %v1712, 0.0
        %v1743 = vmax.f32 %v1367, 0.0
        %v1744 = vmax.f32 %v1483, 0.0
        %v1745 = vmax.f32 %v1599, 0.0
        %v1746 = vmax.f32 %v1715, 0.0
        %v1747 = vmax.f32 %v1369, 0.0
        %v1748 = vmax.f32 %v1485, 0.0
        %v1749 = vmax.f32 %v1601, 0.0
        %v1750 = vmax.f32 %v1717, 0.0
        %v1751 = vpack.c.bf16 %v1723, %v1719
        %v1752 = vpack.c.bf16 %v1724, %v1720
        %v1753 = vpack.c.bf16 %v1725, %v1721
        %v1754 = vpack.c.bf16 %v1726, %v1722
        %v1755 = vpack.c.bf16 %v1731, %v1727
        %v1756 = vpack.c.bf16 %v1732, %v1728
        %v1757 = vpack.c.bf16 %v1733, %v1729
        %v1758 = vpack.c.bf16 %v1734, %v1730
        %v1759 = vpack.c.bf16 %v1739, %v1735
        %v1760 = vpack.c.bf16 %v1740, %v1736
        %v1761 = vpack.c.bf16 %v1741, %v1737
        %v1762 = vpack.c.bf16 %v1742, %v1738
        %v1763 = vpack.c.bf16 %v1747, %v1743
        %v1764 = vpack.c.bf16 %v1748, %v1744
        %v1765 = vpack.c.bf16 %v1749, %v1745
        %v1766 = vpack.c.bf16 %v1750, %v1746
        %v1767 = vld [vmem:[#allocation8] sm:$0xff]
        %v1768 = vld [vmem:[#allocation8 + $0x8] sm:$0xff]
        %v1769 = vld [vmem:[#allocation8 + $0x10] sm:$0xff]
        %v1770 = vld [vmem:[#allocation8 + $0x18] sm:$0xff]
        %v1771 = vld [vmem:[#allocation8 + $0x20] sm:$0xff]
        %v1772 = vld [vmem:[#allocation8 + $0x28] sm:$0xff]
        %v1773 = vld [vmem:[#allocation8 + $0x30] sm:$0xff]
        %v1774 = vld [vmem:[#allocation8 + $0x38] sm:$0xff]
        %v1775 = vld [vmem:[#allocation8 + $0x40] sm:$0xff]
        %v1776 = vld [vmem:[#allocation8 + $0x48] sm:$0xff]
        %v1777 = vld [vmem:[#allocation8 + $0x50] sm:$0xff]
        %v1778 = vld [vmem:[#allocation8 + $0x58] sm:$0xff]
        %v1779 = vld [vmem:[#allocation8 + $0x60] sm:$0xff]
        %v1780 = vld [vmem:[#allocation8 + $0x68] sm:$0xff]
        %v1781 = vld [vmem:[#allocation8 + $0x70] sm:$0xff]
        %v1782 = vld [vmem:[#allocation8 + $0x78] sm:$0xff]
        %v1783 = vld [vmem:[#allocation8 + $0x80] sm:$0xff]
        %v1784 = vld [vmem:[#allocation8 + $0x88] sm:$0xff]
        %v1785 = vld [vmem:[#allocation8 + $0x90] sm:$0xff]
        %v1786 = vld [vmem:[#allocation8 + $0x98] sm:$0xff]
        %v1787 = vld [vmem:[#allocation8 + $0xa0] sm:$0xff]
        %v1788 = vld [vmem:[#allocation8 + $0xa8] sm:$0xff]
        %v1789 = vld [vmem:[#allocation8 + $0xb0] sm:$0xff]
        %v1790 = vld [vmem:[#allocation8 + $0xb8] sm:$0xff]
        %v1791 = vld [vmem:[#allocation8 + $0xc0] sm:$0xff]
        %v1792 = vld [vmem:[#allocation8 + $0xc8] sm:$0xff]
        %v1793 = vld [vmem:[#allocation8 + $0xd0] sm:$0xff]
        %v1794 = vld [vmem:[#allocation8 + $0xd8] sm:$0xff]
        %v1795 = vld [vmem:[#allocation8 + $0xe0] sm:$0xff]
        %v1796 = vld [vmem:[#allocation8 + $0xe8] sm:$0xff]
        %v1797 = vld [vmem:[#allocation8 + $0xf0] sm:$0xff]
        %v1798 = vld [vmem:[#allocation8 + $0xf8] sm:$0xff]
        %v1799 = vld [vmem:[#allocation8 + $0x100] sm:$0xff]
        %v1800 = vld [vmem:[#allocation8 + $0x108] sm:$0xff]
        %v1801 = vld [vmem:[#allocation8 + $0x110] sm:$0xff]
        %v1802 = vld [vmem:[#allocation8 + $0x118] sm:$0xff]
        %v1803 = vld [vmem:[#allocation8 + $0x120] sm:$0xff]
        %v1804 = vld [vmem:[#allocation8 + $0x128] sm:$0xff]
        %v1805 = vld [vmem:[#allocation8 + $0x130] sm:$0xff]
        %v1806 = vld [vmem:[#allocation8 + $0x138] sm:$0xff]
        %v1807 = vld [vmem:[#allocation8 + $0x140] sm:$0xff]
        %v1808 = vld [vmem:[#allocation8 + $0x148] sm:$0xff]
        %v1809 = vld [vmem:[#allocation8 + $0x150] sm:$0xff]
        %v1810 = vld [vmem:[#allocation8 + $0x158] sm:$0xff]
        %v1811 = vld [vmem:[#allocation8 + $0x160] sm:$0xff]
        %v1812 = vld [vmem:[#allocation8 + $0x168] sm:$0xff]
        %v1813 = vld [vmem:[#allocation8 + $0x170] sm:$0xff]
        %v1814 = vld [vmem:[#allocation8 + $0x178] sm:$0xff]
        %v1815 = vld [vmem:[#allocation8 + $0x180] sm:$0xff]
        %v1816 = vld [vmem:[#allocation8 + $0x188] sm:$0xff]
        %v1817 = vld [vmem:[#allocation8 + $0x190] sm:$0xff]
        %v1818 = vld [vmem:[#allocation8 + $0x198] sm:$0xff]
        %v1819 = vld [vmem:[#allocation8 + $0x1a0] sm:$0xff]
        %v1820 = vld [vmem:[#allocation8 + $0x1a8] sm:$0xff]
        %v1821 = vld [vmem:[#allocation8 + $0x1b0] sm:$0xff]
        %v1822 = vld [vmem:[#allocation8 + $0x1b8] sm:$0xff]
        %v1823 = vld [vmem:[#allocation8 + $0x1c0] sm:$0xff]
        %v1824 = vld [vmem:[#allocation8 + $0x1c8] sm:$0xff]
        %v1825 = vld [vmem:[#allocation8 + $0x1d0] sm:$0xff]
        %v1826 = vld [vmem:[#allocation8 + $0x1d8] sm:$0xff]
        %v1827 = vld [vmem:[#allocation8 + $0x1e0] sm:$0xff]
        %v1828 = vld [vmem:[#allocation8 + $0x1e8] sm:$0xff]
        %v1829 = vld [vmem:[#allocation8 + $0x1f0] sm:$0xff]
        %v1830 = vld [vmem:[#allocation8 + $0x1f8] sm:$0xff]
        %v1831 = vld [vmem:[#allocation8 + $0x200] sm:$0xff]
        %v1832 = vld [vmem:[#allocation8 + $0x208] sm:$0xff]
        %v1833 = vld [vmem:[#allocation8 + $0x210] sm:$0xff]
        %v1834 = vld [vmem:[#allocation8 + $0x218] sm:$0xff]
        %v1835 = vld [vmem:[#allocation8 + $0x220] sm:$0xff]
        %v1836 = vld [vmem:[#allocation8 + $0x228] sm:$0xff]
        %v1837 = vld [vmem:[#allocation8 + $0x230] sm:$0xff]
        %v1838 = vld [vmem:[#allocation8 + $0x238] sm:$0xff]
        %v1839 = vld [vmem:[#allocation8 + $0x240] sm:$0xff]
        %v1840 = vld [vmem:[#allocation8 + $0x248] sm:$0xff]
        %v1841 = vld [vmem:[#allocation8 + $0x250] sm:$0xff]
        %v1842 = vld [vmem:[#allocation8 + $0x258] sm:$0xff]
        %v1843 = vld [vmem:[#allocation8 + $0x260] sm:$0xff]
        %v1844 = vld [vmem:[#allocation8 + $0x268] sm:$0xff]
        %v1845 = vld [vmem:[#allocation8 + $0x270] sm:$0xff]
        %v1846 = vld [vmem:[#allocation8 + $0x278] sm:$0xff]
        %v1847 = vld [vmem:[#allocation8 + $0x280] sm:$0xff]
        %v1848 = vld [vmem:[#allocation8 + $0x288] sm:$0xff]
        %v1849 = vld [vmem:[#allocation8 + $0x290] sm:$0xff]
        %v1850 = vld [vmem:[#allocation8 + $0x298] sm:$0xff]
        %v1851 = vld [vmem:[#allocation8 + $0x2a0] sm:$0xff]
        %v1852 = vld [vmem:[#allocation8 + $0x2a8] sm:$0xff]
        %v1853 = vld [vmem:[#allocation8 + $0x2b0] sm:$0xff]
        %v1854 = vld [vmem:[#allocation8 + $0x2b8] sm:$0xff]
        %v1855 = vld [vmem:[#allocation8 + $0x2c0] sm:$0xff]
        %v1856 = vld [vmem:[#allocation8 + $0x2c8] sm:$0xff]
        %v1857 = vld [vmem:[#allocation8 + $0x2d0] sm:$0xff]
        %v1858 = vld [vmem:[#allocation8 + $0x2d8] sm:$0xff]
        %v1859 = vld [vmem:[#allocation8 + $0x2e0] sm:$0xff]
        %v1860 = vld [vmem:[#allocation8 + $0x2e8] sm:$0xff]
        %v1861 = vld [vmem:[#allocation8 + $0x2f0] sm:$0xff]
        %v1862 = vld [vmem:[#allocation8 + $0x2f8] sm:$0xff]
        %v1863 = vld [vmem:[#allocation8 + $0x300] sm:$0xff]
        %v1864 = vld [vmem:[#allocation8 + $0x308] sm:$0xff]
        %v1865 = vld [vmem:[#allocation8 + $0x310] sm:$0xff]
        %v1866 = vld [vmem:[#allocation8 + $0x318] sm:$0xff]
        %v1867 = vld [vmem:[#allocation8 + $0x320] sm:$0xff]
        %v1868 = vld [vmem:[#allocation8 + $0x328] sm:$0xff]
        %v1869 = vld [vmem:[#allocation8 + $0x330] sm:$0xff]
        %v1870 = vld [vmem:[#allocation8 + $0x338] sm:$0xff]
        %v1871 = vld [vmem:[#allocation8 + $0x340] sm:$0xff]
        %v1872 = vld [vmem:[#allocation8 + $0x348] sm:$0xff]
        %v1873 = vld [vmem:[#allocation8 + $0x350] sm:$0xff]
        %v1874 = vld [vmem:[#allocation8 + $0x358] sm:$0xff]
        %v1875 = vld [vmem:[#allocation8 + $0x360] sm:$0xff]
        %v1876 = vld [vmem:[#allocation8 + $0x368] sm:$0xff]
        %v1877 = vld [vmem:[#allocation8 + $0x370] sm:$0xff]
        %v1878 = vld [vmem:[#allocation8 + $0x378] sm:$0xff]
        %v1879 = vld [vmem:[#allocation8 + $0x380] sm:$0xff]
        %v1880 = vld [vmem:[#allocation8 + $0x388] sm:$0xff]
        %v1881 = vld [vmem:[#allocation8 + $0x390] sm:$0xff]
        %v1882 = vld [vmem:[#allocation8 + $0x398] sm:$0xff]
        %v1883 = vld [vmem:[#allocation8 + $0x3a0] sm:$0xff]
        %v1884 = vld [vmem:[#allocation8 + $0x3a8] sm:$0xff]
        %v1885 = vld [vmem:[#allocation8 + $0x3b0] sm:$0xff]
        %v1886 = vld [vmem:[#allocation8 + $0x3b8] sm:$0xff]
        %v1887 = vld [vmem:[#allocation8 + $0x3c0] sm:$0xff]
        %v1888 = vld [vmem:[#allocation8 + $0x3c8] sm:$0xff]
        %v1889 = vld [vmem:[#allocation8 + $0x3d0] sm:$0xff]
        %v1890 = vld [vmem:[#allocation8 + $0x3d8] sm:$0xff]
        %v1891 = vld [vmem:[#allocation8 + $0x3e0] sm:$0xff]
        %v1892 = vld [vmem:[#allocation8 + $0x3e8] sm:$0xff]
        %v1893 = vld [vmem:[#allocation8 + $0x3f0] sm:$0xff]
        %v1894 = vld [vmem:[#allocation8 + $0x3f8] sm:$0xff]
        %v1895 = vld [vmem:[#allocation10] sm:$0xf]
        %v1897 = vperm.slane %v1895, 0
        %v1898 = vperm.slane %v1895, 1
        %v1899 = vperm.slane %v1895, 2
        %v1900 = vperm.slane %v1895, 3
        %v2033 = vunpack.c.l.b16 %v1767
        %v2034 = vunpack.c.h.b16 %v1767
        %v2035 = vunpack.c.l.b16 %v1768
        %v2036 = vunpack.c.h.b16 %v1768
        %v2037 = vunpack.c.l.b16 %v1769
        %v2038 = vunpack.c.h.b16 %v1769
        %v2039 = vunpack.c.l.b16 %v1770
        %v2040 = vunpack.c.h.b16 %v1770
        %v2041 = vunpack.c.l.b16 %v1771
        %v2042 = vunpack.c.h.b16 %v1771
        %v2043 = vunpack.c.l.b16 %v1772
        %v2044 = vunpack.c.h.b16 %v1772
        %v2045 = vunpack.c.l.b16 %v1773
        %v2046 = vunpack.c.h.b16 %v1773
        %v2047 = vunpack.c.l.b16 %v1774
        %v2048 = vunpack.c.h.b16 %v1774
        %v2049 = vunpack.c.l.b16 %v1775
        %v2050 = vunpack.c.h.b16 %v1775
        %v2051 = vunpack.c.l.b16 %v1776
        %v2052 = vunpack.c.h.b16 %v1776
        %v2053 = vunpack.c.l.b16 %v1777
        %v2054 = vunpack.c.h.b16 %v1777
        %v2055 = vunpack.c.l.b16 %v1778
        %v2056 = vunpack.c.h.b16 %v1778
        %v2057 = vunpack.c.l.b16 %v1779
        %v2058 = vunpack.c.h.b16 %v1779
        %v2059 = vunpack.c.l.b16 %v1780
        %v2060 = vunpack.c.h.b16 %v1780
        %v2061 = vunpack.c.l.b16 %v1781
        %v2062 = vunpack.c.h.b16 %v1781
        %v2063 = vunpack.c.l.b16 %v1782
        %v2064 = vunpack.c.h.b16 %v1782
        %v2065 = vunpack.c.l.b16 %v1783
        %v2066 = vunpack.c.h.b16 %v1783
        %v2067 = vunpack.c.l.b16 %v1784
        %v2068 = vunpack.c.h.b16 %v1784
        %v2069 = vunpack.c.l.b16 %v1785
        %v2070 = vunpack.c.h.b16 %v1785
        %v2071 = vunpack.c.l.b16 %v1786
        %v2072 = vunpack.c.h.b16 %v1786
        %v2073 = vunpack.c.l.b16 %v1787
        %v2074 = vunpack.c.h.b16 %v1787
        %v2075 = vunpack.c.l.b16 %v1788
        %v2076 = vunpack.c.h.b16 %v1788
        %v2077 = vunpack.c.l.b16 %v1789
        %v2078 = vunpack.c.h.b16 %v1789
        %v2079 = vunpack.c.l.b16 %v1790
        %v2080 = vunpack.c.h.b16 %v1790
        %v2081 = vunpack.c.l.b16 %v1791
        %v2082 = vunpack.c.h.b16 %v1791
        %v2083 = vunpack.c.l.b16 %v1792
        %v2084 = vunpack.c.h.b16 %v1792
        %v2085 = vunpack.c.l.b16 %v1793
        %v2086 = vunpack.c.h.b16 %v1793
        %v2087 = vunpack.c.l.b16 %v1794
        %v2088 = vunpack.c.h.b16 %v1794
        %v2089 = vunpack.c.l.b16 %v1795
        %v2090 = vunpack.c.h.b16 %v1795
        %v2091 = vunpack.c.l.b16 %v1796
        %v2092 = vunpack.c.h.b16 %v1796
        %v2093 = vunpack.c.l.b16 %v1797
        %v2094 = vunpack.c.h.b16 %v1797
        %v2095 = vunpack.c.l.b16 %v1798
        %v2096 = vunpack.c.h.b16 %v1798
        %v2097 = vunpack.c.l.b16 %v1799
        %v2098 = vunpack.c.h.b16 %v1799
        %v2099 = vunpack.c.l.b16 %v1800
        %v2100 = vunpack.c.h.b16 %v1800
        %v2101 = vunpack.c.l.b16 %v1801
        %v2102 = vunpack.c.h.b16 %v1801
        %v2103 = vunpack.c.l.b16 %v1802
        %v2104 = vunpack.c.h.b16 %v1802
        %v2105 = vunpack.c.l.b16 %v1803
        %v2106 = vunpack.c.h.b16 %v1803
        %v2107 = vunpack.c.l.b16 %v1804
        %v2108 = vunpack.c.h.b16 %v1804
        %v2109 = vunpack.c.l.b16 %v1805
        %v2110 = vunpack.c.h.b16 %v1805
        %v2111 = vunpack.c.l.b16 %v1806
        %v2112 = vunpack.c.h.b16 %v1806
        %v2113 = vunpack.c.l.b16 %v1807
        %v2114 = vunpack.c.h.b16 %v1807
        %v2115 = vunpack.c.l.b16 %v1808
        %v2116 = vunpack.c.h.b16 %v1808
        %v2117 = vunpack.c.l.b16 %v1809
        %v2118 = vunpack.c.h.b16 %v1809
        %v2119 = vunpack.c.l.b16 %v1810
        %v2120 = vunpack.c.h.b16 %v1810
        %v2121 = vunpack.c.l.b16 %v1811
        %v2122 = vunpack.c.h.b16 %v1811
        %v2123 = vunpack.c.l.b16 %v1812
        %v2124 = vunpack.c.h.b16 %v1812
        %v2125 = vunpack.c.l.b16 %v1813
        %v2126 = vunpack.c.h.b16 %v1813
        %v2127 = vunpack.c.l.b16 %v1814
        %v2128 = vunpack.c.h.b16 %v1814
        %v2129 = vunpack.c.l.b16 %v1815
        %v2130 = vunpack.c.h.b16 %v1815
        %v2131 = vunpack.c.l.b16 %v1816
        %v2132 = vunpack.c.h.b16 %v1816
        %v2133 = vunpack.c.l.b16 %v1817
        %v2134 = vunpack.c.h.b16 %v1817
        %v2135 = vunpack.c.l.b16 %v1818
        %v2136 = vunpack.c.h.b16 %v1818
        %v2137 = vunpack.c.l.b16 %v1819
        %v2138 = vunpack.c.h.b16 %v1819
        %v2139 = vunpack.c.l.b16 %v1820
        %v2140 = vunpack.c.h.b16 %v1820
        %v2141 = vunpack.c.l.b16 %v1821
        %v2142 = vunpack.c.h.b16 %v1821
        %v2143 = vunpack.c.l.b16 %v1822
        %v2144 = vunpack.c.h.b16 %v1822
        %v2145 = vunpack.c.l.b16 %v1823
        %v2146 = vunpack.c.h.b16 %v1823
        %v2147 = vunpack.c.l.b16 %v1824
        %v2148 = vunpack.c.h.b16 %v1824
        %v2149 = vunpack.c.l.b16 %v1825
        %v2150 = vunpack.c.h.b16 %v1825
        %v2151 = vunpack.c.l.b16 %v1826
        %v2152 = vunpack.c.h.b16 %v1826
        %v2153 = vunpack.c.l.b16 %v1827
        %v2154 = vunpack.c.h.b16 %v1827
        %v2155 = vunpack.c.l.b16 %v1828
        %v2156 = vunpack.c.h.b16 %v1828
        %v2157 = vunpack.c.l.b16 %v1829
        %v2158 = vunpack.c.h.b16 %v1829
        %v2159 = vunpack.c.l.b16 %v1830
        %v2160 = vunpack.c.h.b16 %v1830
        %v2161 = vunpack.c.l.b16 %v1831
        %v2162 = vunpack.c.h.b16 %v1831
        %v2163 = vunpack.c.l.b16 %v1832
        %v2164 = vunpack.c.h.b16 %v1832
        %v2165 = vunpack.c.l.b16 %v1833
        %v2166 = vunpack.c.h.b16 %v1833
        %v2167 = vunpack.c.l.b16 %v1834
        %v2168 = vunpack.c.h.b16 %v1834
        %v2169 = vunpack.c.l.b16 %v1835
        %v2170 = vunpack.c.h.b16 %v1835
        %v2171 = vunpack.c.l.b16 %v1836
        %v2172 = vunpack.c.h.b16 %v1836
        %v2173 = vunpack.c.l.b16 %v1837
        %v2174 = vunpack.c.h.b16 %v1837
        %v2175 = vunpack.c.l.b16 %v1838
        %v2176 = vunpack.c.h.b16 %v1838
        %v2177 = vunpack.c.l.b16 %v1839
        %v2178 = vunpack.c.h.b16 %v1839
        %v2179 = vunpack.c.l.b16 %v1840
        %v2180 = vunpack.c.h.b16 %v1840
        %v2181 = vunpack.c.l.b16 %v1841
        %v2182 = vunpack.c.h.b16 %v1841
        %v2183 = vunpack.c.l.b16 %v1842
        %v2184 = vunpack.c.h.b16 %v1842
        %v2185 = vunpack.c.l.b16 %v1843
        %v2186 = vunpack.c.h.b16 %v1843
        %v2187 = vunpack.c.l.b16 %v1844
        %v2188 = vunpack.c.h.b16 %v1844
        %v2189 = vunpack.c.l.b16 %v1845
        %v2190 = vunpack.c.h.b16 %v1845
        %v2191 = vunpack.c.l.b16 %v1846
        %v2192 = vunpack.c.h.b16 %v1846
        %v2193 = vunpack.c.l.b16 %v1847
        %v2194 = vunpack.c.h.b16 %v1847
        %v2195 = vunpack.c.l.b16 %v1848
        %v2196 = vunpack.c.h.b16 %v1848
        %v2197 = vunpack.c.l.b16 %v1849
        %v2198 = vunpack.c.h.b16 %v1849
        %v2199 = vunpack.c.l.b16 %v1850
        %v2200 = vunpack.c.h.b16 %v1850
        %v2201 = vunpack.c.l.b16 %v1851
        %v2202 = vunpack.c.h.b16 %v1851
        %v2203 = vunpack.c.l.b16 %v1852
        %v2204 = vunpack.c.h.b16 %v1852
        %v2205 = vunpack.c.l.b16 %v1853
        %v2206 = vunpack.c.h.b16 %v1853
        %v2207 = vunpack.c.l.b16 %v1854
        %v2208 = vunpack.c.h.b16 %v1854
        %v2209 = vunpack.c.l.b16 %v1855
        %v2210 = vunpack.c.h.b16 %v1855
        %v2211 = vunpack.c.l.b16 %v1856
        %v2212 = vunpack.c.h.b16 %v1856
        %v2213 = vunpack.c.l.b16 %v1857
        %v2214 = vunpack.c.h.b16 %v1857
        %v2215 = vunpack.c.l.b16 %v1858
        %v2216 = vunpack.c.h.b16 %v1858
        %v2217 = vunpack.c.l.b16 %v1859
        %v2218 = vunpack.c.h.b16 %v1859
        %v2219 = vunpack.c.l.b16 %v1860
        %v2220 = vunpack.c.h.b16 %v1860
        %v2221 = vunpack.c.l.b16 %v1861
        %v2222 = vunpack.c.h.b16 %v1861
        %v2223 = vunpack.c.l.b16 %v1862
        %v2224 = vunpack.c.h.b16 %v1862
        %v2225 = vunpack.c.l.b16 %v1863
        %v2226 = vunpack.c.h.b16 %v1863
        %v2227 = vunpack.c.l.b16 %v1864
        %v2228 = vunpack.c.h.b16 %v1864
        %v2229 = vunpack.c.l.b16 %v1865
        %v2230 = vunpack.c.h.b16 %v1865
        %v2231 = vunpack.c.l.b16 %v1866
        %v2232 = vunpack.c.h.b16 %v1866
        %v2233 = vunpack.c.l.b16 %v1867
        %v2234 = vunpack.c.h.b16 %v1867
        %v2235 = vunpack.c.l.b16 %v1868
        %v2236 = vunpack.c.h.b16 %v1868
        %v2237 = vunpack.c.l.b16 %v1869
        %v2238 = vunpack.c.h.b16 %v1869
        %v2239 = vunpack.c.l.b16 %v1870
        %v2240 = vunpack.c.h.b16 %v1870
        %v2241 = vunpack.c.l.b16 %v1871
        %v2242 = vunpack.c.h.b16 %v1871
        %v2243 = vunpack.c.l.b16 %v1872
        %v2244 = vunpack.c.h.b16 %v1872
        %v2245 = vunpack.c.l.b16 %v1873
        %v2246 = vunpack.c.h.b16 %v1873
        %v2247 = vunpack.c.l.b16 %v1874
        %v2248 = vunpack.c.h.b16 %v1874
        %v2249 = vunpack.c.l.b16 %v1875
        %v2250 = vunpack.c.h.b16 %v1875
        %v2251 = vunpack.c.l.b16 %v1876
        %v2252 = vunpack.c.h.b16 %v1876
        %v2253 = vunpack.c.l.b16 %v1877
        %v2254 = vunpack.c.h.b16 %v1877
        %v2255 = vunpack.c.l.b16 %v1878
        %v2256 = vunpack.c.h.b16 %v1878
        %v2257 = vunpack.c.l.b16 %v1879
        %v2258 = vunpack.c.h.b16 %v1879
        %v2259 = vunpack.c.l.b16 %v1880
        %v2260 = vunpack.c.h.b16 %v1880
        %v2261 = vunpack.c.l.b16 %v1881
        %v2262 = vunpack.c.h.b16 %v1881
        %v2263 = vunpack.c.l.b16 %v1882
        %v2264 = vunpack.c.h.b16 %v1882
        %v2265 = vunpack.c.l.b16 %v1883
        %v2266 = vunpack.c.h.b16 %v1883
        %v2267 = vunpack.c.l.b16 %v1884
        %v2268 = vunpack.c.h.b16 %v1884
        %v2269 = vunpack.c.l.b16 %v1885
        %v2270 = vunpack.c.h.b16 %v1885
        %v2271 = vunpack.c.l.b16 %v1886
        %v2272 = vunpack.c.h.b16 %v1886
        %v2273 = vunpack.c.l.b16 %v1887
        %v2274 = vunpack.c.h.b16 %v1887
        %v2275 = vunpack.c.l.b16 %v1888
        %v2276 = vunpack.c.h.b16 %v1888
        %v2277 = vunpack.c.l.b16 %v1889
        %v2278 = vunpack.c.h.b16 %v1889
        %v2279 = vunpack.c.l.b16 %v1890
        %v2280 = vunpack.c.h.b16 %v1890
        %v2281 = vunpack.c.l.b16 %v1891
        %v2282 = vunpack.c.h.b16 %v1891
        %v2283 = vunpack.c.l.b16 %v1892
        %v2284 = vunpack.c.h.b16 %v1892
        %v2285 = vunpack.c.l.b16 %v1893
        %v2286 = vunpack.c.h.b16 %v1893
        %v2287 = vunpack.c.l.b16 %v1894
        %v2288 = vunpack.c.h.b16 %v1894
        %v2289 = vpack.c.b16 %v2037, %v2033
        %v2290 = vpack.c.b16 %v2038, %v2034
        %v2291 = vpack.c.b16 %v2039, %v2035
        %v2292 = vpack.c.b16 %v2040, %v2036
        %v2293 = vpack.c.b16 %v2045, %v2041
        %v2294 = vpack.c.b16 %v2046, %v2042
        %v2295 = vpack.c.b16 %v2047, %v2043
        %v2296 = vpack.c.b16 %v2048, %v2044
        %v2297 = vpack.c.b16 %v2053, %v2049
        %v2298 = vpack.c.b16 %v2054, %v2050
        %v2299 = vpack.c.b16 %v2055, %v2051
        %v2300 = vpack.c.b16 %v2056, %v2052
        %v2301 = vpack.c.b16 %v2061, %v2057
        %v2302 = vpack.c.b16 %v2062, %v2058
        %v2303 = vpack.c.b16 %v2063, %v2059
        %v2304 = vpack.c.b16 %v2064, %v2060
        %v2305 = vpack.c.b16 %v2069, %v2065
        %v2306 = vpack.c.b16 %v2070, %v2066
        %v2307 = vpack.c.b16 %v2071, %v2067
        %v2308 = vpack.c.b16 %v2072, %v2068
        %v2309 = vpack.c.b16 %v2077, %v2073
        %v2310 = vpack.c.b16 %v2078, %v2074
        %v2311 = vpack.c.b16 %v2079, %v2075
        %v2312 = vpack.c.b16 %v2080, %v2076
        %v2313 = vpack.c.b16 %v2085, %v2081
        %v2314 = vpack.c.b16 %v2086, %v2082
        %v2315 = vpack.c.b16 %v2087, %v2083
        %v2316 = vpack.c.b16 %v2088, %v2084
        %v2317 = vpack.c.b16 %v2093, %v2089
        %v2318 = vpack.c.b16 %v2094, %v2090
        %v2319 = vpack.c.b16 %v2095, %v2091
        %v2320 = vpack.c.b16 %v2096, %v2092
        %v2321 = vpack.c.b16 %v2101, %v2097
        %v2322 = vpack.c.b16 %v2102, %v2098
        %v2323 = vpack.c.b16 %v2103, %v2099
        %v2324 = vpack.c.b16 %v2104, %v2100
        %v2325 = vpack.c.b16 %v2109, %v2105
        %v2326 = vpack.c.b16 %v2110, %v2106
        %v2327 = vpack.c.b16 %v2111, %v2107
        %v2328 = vpack.c.b16 %v2112, %v2108
        %v2329 = vpack.c.b16 %v2117, %v2113
        %v2330 = vpack.c.b16 %v2118, %v2114
        %v2331 = vpack.c.b16 %v2119, %v2115
        %v2332 = vpack.c.b16 %v2120, %v2116
        %v2333 = vpack.c.b16 %v2125, %v2121
        %v2334 = vpack.c.b16 %v2126, %v2122
        %v2335 = vpack.c.b16 %v2127, %v2123
        %v2336 = vpack.c.b16 %v2128, %v2124
        %v2337 = vpack.c.b16 %v2133, %v2129
        %v2338 = vpack.c.b16 %v2134, %v2130
        %v2339 = vpack.c.b16 %v2135, %v2131
        %v2340 = vpack.c.b16 %v2136, %v2132
        %v2341 = vpack.c.b16 %v2141, %v2137
        %v2342 = vpack.c.b16 %v2142, %v2138
        %v2343 = vpack.c.b16 %v2143, %v2139
        %v2344 = vpack.c.b16 %v2144, %v2140
        %v2345 = vpack.c.b16 %v2149, %v2145
        %v2346 = vpack.c.b16 %v2150, %v2146
        %v2347 = vpack.c.b16 %v2151, %v2147
        %v2348 = vpack.c.b16 %v2152, %v2148
        %v2349 = vpack.c.b16 %v2157, %v2153
        %v2350 = vpack.c.b16 %v2158, %v2154
        %v2351 = vpack.c.b16 %v2159, %v2155
        %v2352 = vpack.c.b16 %v2160, %v2156
        %v2353 = vpack.c.b16 %v2165, %v2161
        %v2354 = vpack.c.b16 %v2166, %v2162
        %v2355 = vpack.c.b16 %v2167, %v2163
        %v2356 = vpack.c.b16 %v2168, %v2164
        %v2357 = vpack.c.b16 %v2173, %v2169
        %v2358 = vpack.c.b16 %v2174, %v2170
        %v2359 = vpack.c.b16 %v2175, %v2171
        %v2360 = vpack.c.b16 %v2176, %v2172
        %v2361 = vpack.c.b16 %v2181, %v2177
        %v2362 = vpack.c.b16 %v2182, %v2178
        %v2363 = vpack.c.b16 %v2183, %v2179
        %v2364 = vpack.c.b16 %v2184, %v2180
        %v2365 = vpack.c.b16 %v2189, %v2185
        %v2366 = vpack.c.b16 %v2190, %v2186
        %v2367 = vpack.c.b16 %v2191, %v2187
        %v2368 = vpack.c.b16 %v2192, %v2188
        %v2369 = vpack.c.b16 %v2197, %v2193
        %v2370 = vpack.c.b16 %v2198, %v2194
        %v2371 = vpack.c.b16 %v2199, %v2195
        %v2372 = vpack.c.b16 %v2200, %v2196
        %v2373 = vpack.c.b16 %v2205, %v2201
        %v2374 = vpack.c.b16 %v2206, %v2202
        %v2375 = vpack.c.b16 %v2207, %v2203
        %v2376 = vpack.c.b16 %v2208, %v2204
        %v2377 = vpack.c.b16 %v2213, %v2209
        %v2378 = vpack.c.b16 %v2214, %v2210
        %v2379 = vpack.c.b16 %v2215, %v2211
        %v2380 = vpack.c.b16 %v2216, %v2212
        %v2381 = vpack.c.b16 %v2221, %v2217
        %v2382 = vpack.c.b16 %v2222, %v2218
        %v2383 = vpack.c.b16 %v2223, %v2219
        %v2384 = vpack.c.b16 %v2224, %v2220
        %v2385 = vpack.c.b16 %v2229, %v2225
        %v2386 = vpack.c.b16 %v2230, %v2226
        %v2387 = vpack.c.b16 %v2231, %v2227
        %v2388 = vpack.c.b16 %v2232, %v2228
        %v2389 = vpack.c.b16 %v2237, %v2233
        %v2390 = vpack.c.b16 %v2238, %v2234
        %v2391 = vpack.c.b16 %v2239, %v2235
        %v2392 = vpack.c.b16 %v2240, %v2236
        %v2393 = vpack.c.b16 %v2245, %v2241
        %v2394 = vpack.c.b16 %v2246, %v2242
        %v2395 = vpack.c.b16 %v2247, %v2243
        %v2396 = vpack.c.b16 %v2248, %v2244
        %v2397 = vpack.c.b16 %v2253, %v2249
        %v2398 = vpack.c.b16 %v2254, %v2250
        %v2399 = vpack.c.b16 %v2255, %v2251
        %v2400 = vpack.c.b16 %v2256, %v2252
        %v2401 = vpack.c.b16 %v2261, %v2257
        %v2402 = vpack.c.b16 %v2262, %v2258
        %v2403 = vpack.c.b16 %v2263, %v2259
        %v2404 = vpack.c.b16 %v2264, %v2260
        %v2405 = vpack.c.b16 %v2269, %v2265
        %v2406 = vpack.c.b16 %v2270, %v2266
        %v2407 = vpack.c.b16 %v2271, %v2267
        %v2408 = vpack.c.b16 %v2272, %v2268
        %v2409 = vpack.c.b16 %v2277, %v2273
        %v2410 = vpack.c.b16 %v2278, %v2274
        %v2411 = vpack.c.b16 %v2279, %v2275
        %v2412 = vpack.c.b16 %v2280, %v2276
        %v2413 = vpack.c.b16 %v2285, %v2281
        %v2414 = vpack.c.b16 %v2286, %v2282
        %v2415 = vpack.c.b16 %v2287, %v2283
        %v2416 = vpack.c.b16 %v2288, %v2284
        %2545 = vmatpush.bf16.msra.mxu0 %v2317
        %2546 = vmatpush.bf16.msra.mxu0 %v2313
        %2547 = vmatpush.bf16.msra.mxu0 %v2309
        %2548 = vmatpush.bf16.msra.mxu0 %v2305
        %2549 = vmatpush.bf16.msra.mxu0 %v2301
        %2550 = vmatpush.bf16.msra.mxu0 %v2297
        %2551 = vmatpush.bf16.msra.mxu0 %v2293
        %2552 = vmatpush.bf16.msra.mxu0 %v2289
        %2553 = vmatmul.bf16.gmra.mxu0 %v1751
        %v2554 = vpop.f32.mrf.mxu0
        %v2555 = vadd.f32 %v1897, %v2554
        %v2556 = vpop.f32.mrf.mxu0
        %v2557 = vadd.f32 %v1897, %v2556
        %2558 = vmatmul.bf16.gmra.mxu0 %v1755
        %v2559 = vpop.f32.mrf.mxu0
        %v2560 = vadd.f32 %v1897, %v2559
        %v2561 = vpop.f32.mrf.mxu0
        %v2562 = vadd.f32 %v1897, %v2561
        %2563 = vmatmul.bf16.gmra.mxu0 %v1759
        %v2564 = vpop.f32.mrf.mxu0
        %v2565 = vadd.f32 %v1897, %v2564
        %v2566 = vpop.f32.mrf.mxu0
        %v2567 = vadd.f32 %v1897, %v2566
        %2568 = vmatmul.bf16.gmra.mxu0 %v1763
        %v2569 = vpop.f32.mrf.mxu0
        %v2570 = vadd.f32 %v1897, %v2569
        %v2571 = vpop.f32.mrf.mxu0
        %v2572 = vadd.f32 %v1897, %v2571
        %2573 = vdwg.mxu0
        %2574 = vmatpush.bf16.msra.mxu0 %v2349
        %2575 = vmatpush.bf16.msra.mxu0 %v2345
        %2576 = vmatpush.bf16.msra.mxu0 %v2341
        %2577 = vmatpush.bf16.msra.mxu0 %v2337
        %2578 = vmatpush.bf16.msra.mxu0 %v2333
        %2579 = vmatpush.bf16.msra.mxu0 %v2329
        %2580 = vmatpush.bf16.msra.mxu0 %v2325
        %2581 = vmatpush.bf16.msra.mxu0 %v2321
        %2582 = vmatmul.bf16.gmra.mxu0 %v1752
        %v2583 = vpop.f32.mrf.mxu0
        %v2584 = vadd.f32 %v2555, %v2583
        %v2585 = vpop.f32.mrf.mxu0
        %v2586 = vadd.f32 %v2557, %v2585
        %2587 = vmatmul.bf16.gmra.mxu0 %v1756
        %v2588 = vpop.f32.mrf.mxu0
        %v2589 = vadd.f32 %v2560, %v2588
        %v2590 = vpop.f32.mrf.mxu0
        %v2591 = vadd.f32 %v2562, %v2590
        %2592 = vmatmul.bf16.gmra.mxu0 %v1760
        %v2593 = vpop.f32.mrf.mxu0
        %v2594 = vadd.f32 %v2565, %v2593
        %v2595 = vpop.f32.mrf.mxu0
        %v2596 = vadd.f32 %v2567, %v2595
        %2597 = vmatmul.bf16.gmra.mxu0 %v1764
        %v2598 = vpop.f32.mrf.mxu0
        %v2599 = vadd.f32 %v2570, %v2598
        %v2600 = vpop.f32.mrf.mxu0
        %v2601 = vadd.f32 %v2572, %v2600
        %2602 = vdwg.mxu0
        %2603 = vmatpush.bf16.msra.mxu0 %v2381
        %2604 = vmatpush.bf16.msra.mxu0 %v2377
        %2605 = vmatpush.bf16.msra.mxu0 %v2373
        %2606 = vmatpush.bf16.msra.mxu0 %v2369
        %2607 = vmatpush.bf16.msra.mxu0 %v2365
        %2608 = vmatpush.bf16.msra.mxu0 %v2361
        %2609 = vmatpush.bf16.msra.mxu0 %v2357
        %2610 = vmatpush.bf16.msra.mxu0 %v2353
        %2611 = vmatmul.bf16.gmra.mxu0 %v1753
        %v2612 = vpop.f32.mrf.mxu0
        %v2613 = vadd.f32 %v2584, %v2612
        %v2614 = vpop.f32.mrf.mxu0
        %v2615 = vadd.f32 %v2586, %v2614
        %2616 = vmatmul.bf16.gmra.mxu0 %v1757
        %v2617 = vpop.f32.mrf.mxu0
        %v2618 = vadd.f32 %v2589, %v2617
        %v2619 = vpop.f32.mrf.mxu0
        %v2620 = vadd.f32 %v2591, %v2619
        %2621 = vmatmul.bf16.gmra.mxu0 %v1761
        %v2622 = vpop.f32.mrf.mxu0
        %v2623 = vadd.f32 %v2594, %v2622
        %v2624 = vpop.f32.mrf.mxu0
        %v2625 = vadd.f32 %v2596, %v2624
        %2626 = vmatmul.bf16.gmra.mxu0 %v1765
        %v2627 = vpop.f32.mrf.mxu0
        %v2628 = vadd.f32 %v2599, %v2627
        %v2629 = vpop.f32.mrf.mxu0
        %v2630 = vadd.f32 %v2601, %v2629
        %2631 = vdwg.mxu0
        %2632 = vmatpush.bf16.msra.mxu0 %v2413
        %2633 = vmatpush.bf16.msra.mxu0 %v2409
        %2634 = vmatpush.bf16.msra.mxu0 %v2405
        %2635 = vmatpush.bf16.msra.mxu0 %v2401
        %2636 = vmatpush.bf16.msra.mxu0 %v2397
        %2637 = vmatpush.bf16.msra.mxu0 %v2393
        %2638 = vmatpush.bf16.msra.mxu0 %v2389
        %2639 = vmatpush.bf16.msra.mxu0 %v2385
        %2640 = vmatmul.bf16.gmra.mxu0 %v1754
        %v2641 = vpop.f32.mrf.mxu0
        %v2642 = vadd.f32 %v2613, %v2641
        %v2643 = vpop.f32.mrf.mxu0
        %v2644 = vadd.f32 %v2615, %v2643
        %2645 = vmatmul.bf16.gmra.mxu0 %v1758
        %v2646 = vpop.f32.mrf.mxu0
        %v2647 = vadd.f32 %v2618, %v2646
        %v2648 = vpop.f32.mrf.mxu0
        %v2649 = vadd.f32 %v2620, %v2648
        %2650 = vmatmul.bf16.gmra.mxu0 %v1762
        %v2651 = vpop.f32.mrf.mxu0
        %v2652 = vadd.f32 %v2623, %v2651
        %v2653 = vpop.f32.mrf.mxu0
        %v2654 = vadd.f32 %v2625, %v2653
        %2655 = vmatmul.bf16.gmra.mxu0 %v1766
        %v2656 = vpop.f32.mrf.mxu0
        %v2657 = vadd.f32 %v2628, %v2656
        %v2658 = vpop.f32.mrf.mxu0
        %v2659 = vadd.f32 %v2630, %v2658
        %2660 = vdwg.mxu0
        %2661 = vmatpush.bf16.msra.mxu0 %v2318
        %2662 = vmatpush.bf16.msra.mxu0 %v2314
        %2663 = vmatpush.bf16.msra.mxu0 %v2310
        %2664 = vmatpush.bf16.msra.mxu0 %v2306
        %2665 = vmatpush.bf16.msra.mxu0 %v2302
        %2666 = vmatpush.bf16.msra.mxu0 %v2298
        %2667 = vmatpush.bf16.msra.mxu0 %v2294
        %2668 = vmatpush.bf16.msra.mxu0 %v2290
        %2669 = vmatmul.bf16.gmra.mxu0 %v1751
        %v2670 = vpop.f32.mrf.mxu0
        %v2671 = vadd.f32 %v1898, %v2670
        %v2672 = vpop.f32.mrf.mxu0
        %v2673 = vadd.f32 %v1898, %v2672
        %2674 = vmatmul.bf16.gmra.mxu0 %v1755
        %v2675 = vpop.f32.mrf.mxu0
        %v2676 = vadd.f32 %v1898, %v2675
        %v2677 = vpop.f32.mrf.mxu0
        %v2678 = vadd.f32 %v1898, %v2677
        %2679 = vmatmul.bf16.gmra.mxu0 %v1759
        %v2680 = vpop.f32.mrf.mxu0
        %v2681 = vadd.f32 %v1898, %v2680
        %v2682 = vpop.f32.mrf.mxu0
        %v2683 = vadd.f32 %v1898, %v2682
        %2684 = vmatmul.bf16.gmra.mxu0 %v1763
        %v2685 = vpop.f32.mrf.mxu0
        %v2686 = vadd.f32 %v1898, %v2685
        %v2687 = vpop.f32.mrf.mxu0
        %v2688 = vadd.f32 %v1898, %v2687
        %2689 = vdwg.mxu0
        %2690 = vmatpush.bf16.msra.mxu0 %v2350
        %2691 = vmatpush.bf16.msra.mxu0 %v2346
        %2692 = vmatpush.bf16.msra.mxu0 %v2342
        %2693 = vmatpush.bf16.msra.mxu0 %v2338
        %2694 = vmatpush.bf16.msra.mxu0 %v2334
        %2695 = vmatpush.bf16.msra.mxu0 %v2330
        %2696 = vmatpush.bf16.msra.mxu0 %v2326
        %2697 = vmatpush.bf16.msra.mxu0 %v2322
        %2698 = vmatmul.bf16.gmra.mxu0 %v1752
        %v2699 = vpop.f32.mrf.mxu0
        %v2700 = vadd.f32 %v2671, %v2699
        %v2701 = vpop.f32.mrf.mxu0
        %v2702 = vadd.f32 %v2673, %v2701
        %2703 = vmatmul.bf16.gmra.mxu0 %v1756
        %v2704 = vpop.f32.mrf.mxu0
        %v2705 = vadd.f32 %v2676, %v2704
        %v2706 = vpop.f32.mrf.mxu0
        %v2707 = vadd.f32 %v2678, %v2706
        %2708 = vmatmul.bf16.gmra.mxu0 %v1760
        %v2709 = vpop.f32.mrf.mxu0
        %v2710 = vadd.f32 %v2681, %v2709
        %v2711 = vpop.f32.mrf.mxu0
        %v2712 = vadd.f32 %v2683, %v2711
        %2713 = vmatmul.bf16.gmra.mxu0 %v1764
        %v2714 = vpop.f32.mrf.mxu0
        %v2715 = vadd.f32 %v2686, %v2714
        %v2716 = vpop.f32.mrf.mxu0
        %v2717 = vadd.f32 %v2688, %v2716
        %2718 = vdwg.mxu0
        %2719 = vmatpush.bf16.msra.mxu0 %v2382
        %2720 = vmatpush.bf16.msra.mxu0 %v2378
        %2721 = vmatpush.bf16.msra.mxu0 %v2374
        %2722 = vmatpush.bf16.msra.mxu0 %v2370
        %2723 = vmatpush.bf16.msra.mxu0 %v2366
        %2724 = vmatpush.bf16.msra.mxu0 %v2362
        %2725 = vmatpush.bf16.msra.mxu0 %v2358
        %2726 = vmatpush.bf16.msra.mxu0 %v2354
        %2727 = vmatmul.bf16.gmra.mxu0 %v1753
        %v2728 = vpop.f32.mrf.mxu0
        %v2729 = vadd.f32 %v2700, %v2728
        %v2730 = vpop.f32.mrf.mxu0
        %v2731 = vadd.f32 %v2702, %v2730
        %2732 = vmatmul.bf16.gmra.mxu0 %v1757
        %v2733 = vpop.f32.mrf.mxu0
        %v2734 = vadd.f32 %v2705, %v2733
        %v2735 = vpop.f32.mrf.mxu0
        %v2736 = vadd.f32 %v2707, %v2735
        %2737 = vmatmul.bf16.gmra.mxu0 %v1761
        %v2738 = vpop.f32.mrf.mxu0
        %v2739 = vadd.f32 %v2710, %v2738
        %v2740 = vpop.f32.mrf.mxu0
        %v2741 = vadd.f32 %v2712, %v2740
        %2742 = vmatmul.bf16.gmra.mxu0 %v1765
        %v2743 = vpop.f32.mrf.mxu0
        %v2744 = vadd.f32 %v2715, %v2743
        %v2745 = vpop.f32.mrf.mxu0
        %v2746 = vadd.f32 %v2717, %v2745
        %2747 = vdwg.mxu0
        %2748 = vmatpush.bf16.msra.mxu0 %v2414
        %2749 = vmatpush.bf16.msra.mxu0 %v2410
        %2750 = vmatpush.bf16.msra.mxu0 %v2406
        %2751 = vmatpush.bf16.msra.mxu0 %v2402
        %2752 = vmatpush.bf16.msra.mxu0 %v2398
        %2753 = vmatpush.bf16.msra.mxu0 %v2394
        %2754 = vmatpush.bf16.msra.mxu0 %v2390
        %2755 = vmatpush.bf16.msra.mxu0 %v2386
        %2756 = vmatmul.bf16.gmra.mxu0 %v1754
        %v2757 = vpop.f32.mrf.mxu0
        %v2758 = vadd.f32 %v2729, %v2757
        %v2759 = vpop.f32.mrf.mxu0
        %v2760 = vadd.f32 %v2731, %v2759
        %2761 = vmatmul.bf16.gmra.mxu0 %v1758
        %v2762 = vpop.f32.mrf.mxu0
        %v2763 = vadd.f32 %v2734, %v2762
        %v2764 = vpop.f32.mrf.mxu0
        %v2765 = vadd.f32 %v2736, %v2764
        %2766 = vmatmul.bf16.gmra.mxu0 %v1762
        %v2767 = vpop.f32.mrf.mxu0
        %v2768 = vadd.f32 %v2739, %v2767
        %v2769 = vpop.f32.mrf.mxu0
        %v2770 = vadd.f32 %v2741, %v2769
        %2771 = vmatmul.bf16.gmra.mxu0 %v1766
        %v2772 = vpop.f32.mrf.mxu0
        %v2773 = vadd.f32 %v2744, %v2772
        %v2774 = vpop.f32.mrf.mxu0
        %v2775 = vadd.f32 %v2746, %v2774
        %2776 = vdwg.mxu0
        %2777 = vmatpush.bf16.msra.mxu0 %v2319
        %2778 = vmatpush.bf16.msra.mxu0 %v2315
        %2779 = vmatpush.bf16.msra.mxu0 %v2311
        %2780 = vmatpush.bf16.msra.mxu0 %v2307
        %2781 = vmatpush.bf16.msra.mxu0 %v2303
        %2782 = vmatpush.bf16.msra.mxu0 %v2299
        %2783 = vmatpush.bf16.msra.mxu0 %v2295
        %2784 = vmatpush.bf16.msra.mxu0 %v2291
        %2785 = vmatmul.bf16.gmra.mxu0 %v1751
        %v2786 = vpop.f32.mrf.mxu0
        %v2787 = vadd.f32 %v1899, %v2786
        %v2788 = vpop.f32.mrf.mxu0
        %v2789 = vadd.f32 %v1899, %v2788
        %2790 = vmatmul.bf16.gmra.mxu0 %v1755
        %v2791 = vpop.f32.mrf.mxu0
        %v2792 = vadd.f32 %v1899, %v2791
        %v2793 = vpop.f32.mrf.mxu0
        %v2794 = vadd.f32 %v1899, %v2793
        %2795 = vmatmul.bf16.gmra.mxu0 %v1759
        %v2796 = vpop.f32.mrf.mxu0
        %v2797 = vadd.f32 %v1899, %v2796
        %v2798 = vpop.f32.mrf.mxu0
        %v2799 = vadd.f32 %v1899, %v2798
        %2800 = vmatmul.bf16.gmra.mxu0 %v1763
        %v2801 = vpop.f32.mrf.mxu0
        %v2802 = vadd.f32 %v1899, %v2801
        %v2803 = vpop.f32.mrf.mxu0
        %v2804 = vadd.f32 %v1899, %v2803
        %2805 = vdwg.mxu0
        %2806 = vmatpush.bf16.msra.mxu0 %v2351
        %2807 = vmatpush.bf16.msra.mxu0 %v2347
        %2808 = vmatpush.bf16.msra.mxu0 %v2343
        %2809 = vmatpush.bf16.msra.mxu0 %v2339
        %2810 = vmatpush.bf16.msra.mxu0 %v2335
        %2811 = vmatpush.bf16.msra.mxu0 %v2331
        %2812 = vmatpush.bf16.msra.mxu0 %v2327
        %2813 = vmatpush.bf16.msra.mxu0 %v2323
        %2814 = vmatmul.bf16.gmra.mxu0 %v1752
        %v2815 = vpop.f32.mrf.mxu0
        %v2816 = vadd.f32 %v2787, %v2815
        %v2817 = vpop.f32.mrf.mxu0
        %v2818 = vadd.f32 %v2789, %v2817
        %2819 = vmatmul.bf16.gmra.mxu0 %v1756
        %v2820 = vpop.f32.mrf.mxu0
        %v2821 = vadd.f32 %v2792, %v2820
        %v2822 = vpop.f32.mrf.mxu0
        %v2823 = vadd.f32 %v2794, %v2822
        %2824 = vmatmul.bf16.gmra.mxu0 %v1760
        %v2825 = vpop.f32.mrf.mxu0
        %v2826 = vadd.f32 %v2797, %v2825
        %v2827 = vpop.f32.mrf.mxu0
        %v2828 = vadd.f32 %v2799, %v2827
        %2829 = vmatmul.bf16.gmra.mxu0 %v1764
        %v2830 = vpop.f32.mrf.mxu0
        %v2831 = vadd.f32 %v2802, %v2830
        %v2832 = vpop.f32.mrf.mxu0
        %v2833 = vadd.f32 %v2804, %v2832
        %2834 = vdwg.mxu0
        %2835 = vmatpush.bf16.msra.mxu0 %v2383
        %2836 = vmatpush.bf16.msra.mxu0 %v2379
        %2837 = vmatpush.bf16.msra.mxu0 %v2375
        %2838 = vmatpush.bf16.msra.mxu0 %v2371
        %2839 = vmatpush.bf16.msra.mxu0 %v2367
        %2840 = vmatpush.bf16.msra.mxu0 %v2363
        %2841 = vmatpush.bf16.msra.mxu0 %v2359
        %2842 = vmatpush.bf16.msra.mxu0 %v2355
        %2843 = vmatmul.bf16.gmra.mxu0 %v1753
        %v2844 = vpop.f32.mrf.mxu0
        %v2845 = vadd.f32 %v2816, %v2844
        %v2846 = vpop.f32.mrf.mxu0
        %v2847 = vadd.f32 %v2818, %v2846
        %2848 = vmatmul.bf16.gmra.mxu0 %v1757
        %v2849 = vpop.f32.mrf.mxu0
        %v2850 = vadd.f32 %v2821, %v2849
        %v2851 = vpop.f32.mrf.mxu0
        %v2852 = vadd.f32 %v2823, %v2851
        %2853 = vmatmul.bf16.gmra.mxu0 %v1761
        %v2854 = vpop.f32.mrf.mxu0
        %v2855 = vadd.f32 %v2826, %v2854
        %v2856 = vpop.f32.mrf.mxu0
        %v2857 = vadd.f32 %v2828, %v2856
        %2858 = vmatmul.bf16.gmra.mxu0 %v1765
        %v2859 = vpop.f32.mrf.mxu0
        %v2860 = vadd.f32 %v2831, %v2859
        %v2861 = vpop.f32.mrf.mxu0
        %v2862 = vadd.f32 %v2833, %v2861
        %2863 = vdwg.mxu0
        %2864 = vmatpush.bf16.msra.mxu0 %v2415
        %2865 = vmatpush.bf16.msra.mxu0 %v2411
        %2866 = vmatpush.bf16.msra.mxu0 %v2407
        %2867 = vmatpush.bf16.msra.mxu0 %v2403
        %2868 = vmatpush.bf16.msra.mxu0 %v2399
        %2869 = vmatpush.bf16.msra.mxu0 %v2395
        %2870 = vmatpush.bf16.msra.mxu0 %v2391
        %2871 = vmatpush.bf16.msra.mxu0 %v2387
        %2872 = vmatmul.bf16.gmra.mxu0 %v1754
        %v2873 = vpop.f32.mrf.mxu0
        %v2874 = vadd.f32 %v2845, %v2873
        %v2875 = vpop.f32.mrf.mxu0
        %v2876 = vadd.f32 %v2847, %v2875
        %2877 = vmatmul.bf16.gmra.mxu0 %v1758
        %v2878 = vpop.f32.mrf.mxu0
        %v2879 = vadd.f32 %v2850, %v2878
        %v2880 = vpop.f32.mrf.mxu0
        %v2881 = vadd.f32 %v2852, %v2880
        %2882 = vmatmul.bf16.gmra.mxu0 %v1762
        %v2883 = vpop.f32.mrf.mxu0
        %v2884 = vadd.f32 %v2855, %v2883
        %v2885 = vpop.f32.mrf.mxu0
        %v2886 = vadd.f32 %v2857, %v2885
        %2887 = vmatmul.bf16.gmra.mxu0 %v1766
        %v2888 = vpop.f32.mrf.mxu0
        %v2889 = vadd.f32 %v2860, %v2888
        %v2890 = vpop.f32.mrf.mxu0
        %v2891 = vadd.f32 %v2862, %v2890
        %2892 = vdwg.mxu0
        %2893 = vmatpush.bf16.msra.mxu0 %v2320
        %2894 = vmatpush.bf16.msra.mxu0 %v2316
        %2895 = vmatpush.bf16.msra.mxu0 %v2312
        %2896 = vmatpush.bf16.msra.mxu0 %v2308
        %2897 = vmatpush.bf16.msra.mxu0 %v2304
        %2898 = vmatpush.bf16.msra.mxu0 %v2300
        %2899 = vmatpush.bf16.msra.mxu0 %v2296
        %2900 = vmatpush.bf16.msra.mxu0 %v2292
        %2901 = vmatmul.bf16.gmra.mxu0 %v1751
        %v2902 = vpop.f32.mrf.mxu0
        %v2903 = vadd.f32 %v1900, %v2902
        %v2904 = vpop.f32.mrf.mxu0
        %v2905 = vadd.f32 %v1900, %v2904
        %2906 = vmatmul.bf16.gmra.mxu0 %v1755
        %v2907 = vpop.f32.mrf.mxu0
        %v2908 = vadd.f32 %v1900, %v2907
        %v2909 = vpop.f32.mrf.mxu0
        %v2910 = vadd.f32 %v1900, %v2909
        %2911 = vmatmul.bf16.gmra.mxu0 %v1759
        %v2912 = vpop.f32.mrf.mxu0
        %v2913 = vadd.f32 %v1900, %v2912
        %v2914 = vpop.f32.mrf.mxu0
        %v2915 = vadd.f32 %v1900, %v2914
        %2916 = vmatmul.bf16.gmra.mxu0 %v1763
        %v2917 = vpop.f32.mrf.mxu0
        %v2918 = vadd.f32 %v1900, %v2917
        %v2919 = vpop.f32.mrf.mxu0
        %v2920 = vadd.f32 %v1900, %v2919
        %2921 = vdwg.mxu0
        %2922 = vmatpush.bf16.msra.mxu0 %v2352
        %2923 = vmatpush.bf16.msra.mxu0 %v2348
        %2924 = vmatpush.bf16.msra.mxu0 %v2344
        %2925 = vmatpush.bf16.msra.mxu0 %v2340
        %2926 = vmatpush.bf16.msra.mxu0 %v2336
        %2927 = vmatpush.bf16.msra.mxu0 %v2332
        %2928 = vmatpush.bf16.msra.mxu0 %v2328
        %2929 = vmatpush.bf16.msra.mxu0 %v2324
        %2930 = vmatmul.bf16.gmra.mxu0 %v1752
        %v2931 = vpop.f32.mrf.mxu0
        %v2932 = vadd.f32 %v2903, %v2931
        %v2933 = vpop.f32.mrf.mxu0
        %v2934 = vadd.f32 %v2905, %v2933
        %2935 = vmatmul.bf16.gmra.mxu0 %v1756
        %v2936 = vpop.f32.mrf.mxu0
        %v2937 = vadd.f32 %v2908, %v2936
        %v2938 = vpop.f32.mrf.mxu0
        %v2939 = vadd.f32 %v2910, %v2938
        %2940 = vmatmul.bf16.gmra.mxu0 %v1760
        %v2941 = vpop.f32.mrf.mxu0
        %v2942 = vadd.f32 %v2913, %v2941
        %v2943 = vpop.f32.mrf.mxu0
        %v2944 = vadd.f32 %v2915, %v2943
        %2945 = vmatmul.bf16.gmra.mxu0 %v1764
        %v2946 = vpop.f32.mrf.mxu0
        %v2947 = vadd.f32 %v2918, %v2946
        %v2948 = vpop.f32.mrf.mxu0
        %v2949 = vadd.f32 %v2920, %v2948
        %2950 = vdwg.mxu0
        %2951 = vmatpush.bf16.msra.mxu0 %v2384
        %2952 = vmatpush.bf16.msra.mxu0 %v2380
        %2953 = vmatpush.bf16.msra.mxu0 %v2376
        %2954 = vmatpush.bf16.msra.mxu0 %v2372
        %2955 = vmatpush.bf16.msra.mxu0 %v2368
        %2956 = vmatpush.bf16.msra.mxu0 %v2364
        %2957 = vmatpush.bf16.msra.mxu0 %v2360
        %2958 = vmatpush.bf16.msra.mxu0 %v2356
        %2959 = vmatmul.bf16.gmra.mxu0 %v1753
        %v2960 = vpop.f32.mrf.mxu0
        %v2961 = vadd.f32 %v2932, %v2960
        %v2962 = vpop.f32.mrf.mxu0
        %v2963 = vadd.f32 %v2934, %v2962
        %2964 = vmatmul.bf16.gmra.mxu0 %v1757
        %v2965 = vpop.f32.mrf.mxu0
        %v2966 = vadd.f32 %v2937, %v2965
        %v2967 = vpop.f32.mrf.mxu0
        %v2968 = vadd.f32 %v2939, %v2967
        %2969 = vmatmul.bf16.gmra.mxu0 %v1761
        %v2970 = vpop.f32.mrf.mxu0
        %v2971 = vadd.f32 %v2942, %v2970
        %v2972 = vpop.f32.mrf.mxu0
        %v2973 = vadd.f32 %v2944, %v2972
        %2974 = vmatmul.bf16.gmra.mxu0 %v1765
        %v2975 = vpop.f32.mrf.mxu0
        %v2976 = vadd.f32 %v2947, %v2975
        %v2977 = vpop.f32.mrf.mxu0
        %v2978 = vadd.f32 %v2949, %v2977
        %2979 = vdwg.mxu0
        %2980 = vmatpush.bf16.msra.mxu0 %v2416
        %2981 = vmatpush.bf16.msra.mxu0 %v2412
        %2982 = vmatpush.bf16.msra.mxu0 %v2408
        %2983 = vmatpush.bf16.msra.mxu0 %v2404
        %2984 = vmatpush.bf16.msra.mxu0 %v2400
        %2985 = vmatpush.bf16.msra.mxu0 %v2396
        %2986 = vmatpush.bf16.msra.mxu0 %v2392
        %2987 = vmatpush.bf16.msra.mxu0 %v2388
        %2988 = vmatmul.bf16.gmra.mxu0 %v1754
        %v2989 = vpop.f32.mrf.mxu0
        %v2990 = vadd.f32 %v2961, %v2989
        %v2991 = vpop.f32.mrf.mxu0
        %v2992 = vadd.f32 %v2963, %v2991
        %2993 = vmatmul.bf16.gmra.mxu0 %v1758
        %v2994 = vpop.f32.mrf.mxu0
        %v2995 = vadd.f32 %v2966, %v2994
        %v2996 = vpop.f32.mrf.mxu0
        %v2997 = vadd.f32 %v2968, %v2996
        %2998 = vmatmul.bf16.gmra.mxu0 %v1762
        %v2999 = vpop.f32.mrf.mxu0
        %v3000 = vadd.f32 %v2971, %v2999
        %v3001 = vpop.f32.mrf.mxu0
        %v3002 = vadd.f32 %v2973, %v3001
        %3003 = vmatmul.bf16.gmra.mxu0 %v1766
        %v3004 = vpop.f32.mrf.mxu0
        %v3005 = vadd.f32 %v2976, %v3004
        %v3006 = vpop.f32.mrf.mxu0
        %v3007 = vadd.f32 %v2978, %v3006
        %3008 = vdwg.mxu0
        %v3009 = vmax.f32 %v2642, 0.0
        %v3010 = vmax.f32 %v2758, 0.0
        %v3011 = vmax.f32 %v2874, 0.0
        %v3012 = vmax.f32 %v2990, 0.0
        %v3013 = vmax.f32 %v2644, 0.0
        %v3014 = vmax.f32 %v2760, 0.0
        %v3015 = vmax.f32 %v2876, 0.0
        %v3016 = vmax.f32 %v2992, 0.0
        %v3017 = vmax.f32 %v2647, 0.0
        %v3018 = vmax.f32 %v2763, 0.0
        %v3019 = vmax.f32 %v2879, 0.0
        %v3020 = vmax.f32 %v2995, 0.0
        %v3021 = vmax.f32 %v2649, 0.0
        %v3022 = vmax.f32 %v2765, 0.0
        %v3023 = vmax.f32 %v2881, 0.0
        %v3024 = vmax.f32 %v2997, 0.0
        %v3025 = vmax.f32 %v2652, 0.0
        %v3026 = vmax.f32 %v2768, 0.0
        %v3027 = vmax.f32 %v2884, 0.0
        %v3028 = vmax.f32 %v3000, 0.0
        %v3029 = vmax.f32 %v2654, 0.0
        %v3030 = vmax.f32 %v2770, 0.0
        %v3031 = vmax.f32 %v2886, 0.0
        %v3032 = vmax.f32 %v3002, 0.0
        %v3033 = vmax.f32 %v2657, 0.0
        %v3034 = vmax.f32 %v2773, 0.0
        %v3035 = vmax.f32 %v2889, 0.0
        %v3036 = vmax.f32 %v3005, 0.0
        %v3037 = vmax.f32 %v2659, 0.0
        %v3038 = vmax.f32 %v2775, 0.0
        %v3039 = vmax.f32 %v2891, 0.0
        %v3040 = vmax.f32 %v3007, 0.0
        %v3041 = vpack.c.bf16 %v3013, %v3009
        %v3042 = vpack.c.bf16 %v3014, %v3010
        %v3043 = vpack.c.bf16 %v3015, %v3011
        %v3044 = vpack.c.bf16 %v3016, %v3012
        %v3045 = vpack.c.bf16 %v3021, %v3017
        %v3046 = vpack.c.bf16 %v3022, %v3018
        %v3047 = vpack.c.bf16 %v3023, %v3019
        %v3048 = vpack.c.bf16 %v3024, %v3020
        %v3049 = vpack.c.bf16 %v3029, %v3025
        %v3050 = vpack.c.bf16 %v3030, %v3026
        %v3051 = vpack.c.bf16 %v3031, %v3027
        %v3052 = vpack.c.bf16 %v3032, %v3028
        %v3053 = vpack.c.bf16 %v3037, %v3033
        %v3054 = vpack.c.bf16 %v3038, %v3034
        %v3055 = vpack.c.bf16 %v3039, %v3035
        %v3056 = vpack.c.bf16 %v3040, %v3036
        %v3057 = vld [vmem:[#allocation11] sm:$0xf]
        %v3058 = vld [vmem:[#allocation11 + $0x4] sm:$0xf]
        %v3059 = vld [vmem:[#allocation11 + $0x8] sm:$0xf]
        %v3060 = vld [vmem:[#allocation11 + $0xc] sm:$0xf]
        %v3061 = vld [vmem:[#allocation11 + $0x10] sm:$0xf]
        %v3062 = vld [vmem:[#allocation11 + $0x14] sm:$0xf]
        %v3063 = vld [vmem:[#allocation11 + $0x18] sm:$0xf]
        %v3064 = vld [vmem:[#allocation11 + $0x1c] sm:$0xf]
        %v3065 = vld [vmem:[#allocation11 + $0x20] sm:$0xf]
        %v3066 = vld [vmem:[#allocation11 + $0x24] sm:$0xf]
        %v3067 = vld [vmem:[#allocation11 + $0x28] sm:$0xf]
        %v3068 = vld [vmem:[#allocation11 + $0x2c] sm:$0xf]
        %v3069 = vld [vmem:[#allocation11 + $0x30] sm:$0xf]
        %v3070 = vld [vmem:[#allocation11 + $0x34] sm:$0xf]
        %v3071 = vld [vmem:[#allocation11 + $0x38] sm:$0xf]
        %v3072 = vld [vmem:[#allocation11 + $0x3c] sm:$0xf]
        %v3073 = vld [vmem:[#allocation11 + $0x40] sm:$0xf]
        %v3074 = vld [vmem:[#allocation11 + $0x44] sm:$0xf]
        %v3075 = vld [vmem:[#allocation11 + $0x48] sm:$0xf]
        %v3076 = vld [vmem:[#allocation11 + $0x4c] sm:$0xf]
        %v3077 = vld [vmem:[#allocation11 + $0x50] sm:$0xf]
        %v3078 = vld [vmem:[#allocation11 + $0x54] sm:$0xf]
        %v3079 = vld [vmem:[#allocation11 + $0x58] sm:$0xf]
        %v3080 = vld [vmem:[#allocation11 + $0x5c] sm:$0xf]
        %v3081 = vld [vmem:[#allocation11 + $0x60] sm:$0xf]
        %v3082 = vld [vmem:[#allocation11 + $0x64] sm:$0xf]
        %v3083 = vld [vmem:[#allocation11 + $0x68] sm:$0xf]
        %v3084 = vld [vmem:[#allocation11 + $0x6c] sm:$0xf]
        %v3085 = vld [vmem:[#allocation11 + $0x70] sm:$0xf]
        %v3086 = vld [vmem:[#allocation11 + $0x74] sm:$0xf]
        %v3087 = vld [vmem:[#allocation11 + $0x78] sm:$0xf]
        %v3088 = vld [vmem:[#allocation11 + $0x7c] sm:$0xf]
        %v3089 = vld [vmem:[#allocation11 + $0x80] sm:$0xf]
        %v3090 = vld [vmem:[#allocation11 + $0x84] sm:$0xf]
        %v3091 = vld [vmem:[#allocation11 + $0x88] sm:$0xf]
        %v3092 = vld [vmem:[#allocation11 + $0x8c] sm:$0xf]
        %v3093 = vld [vmem:[#allocation11 + $0x90] sm:$0xf]
        %v3094 = vld [vmem:[#allocation11 + $0x94] sm:$0xf]
        %v3095 = vld [vmem:[#allocation11 + $0x98] sm:$0xf]
        %v3096 = vld [vmem:[#allocation11 + $0x9c] sm:$0xf]
        %v3097 = vld [vmem:[#allocation11 + $0xa0] sm:$0xf]
        %v3098 = vld [vmem:[#allocation11 + $0xa4] sm:$0xf]
        %v3099 = vld [vmem:[#allocation11 + $0xa8] sm:$0xf]
        %v3100 = vld [vmem:[#allocation11 + $0xac] sm:$0xf]
        %v3101 = vld [vmem:[#allocation11 + $0xb0] sm:$0xf]
        %v3102 = vld [vmem:[#allocation11 + $0xb4] sm:$0xf]
        %v3103 = vld [vmem:[#allocation11 + $0xb8] sm:$0xf]
        %v3104 = vld [vmem:[#allocation11 + $0xbc] sm:$0xf]
        %v3105 = vld [vmem:[#allocation11 + $0xc0] sm:$0xf]
        %v3106 = vld [vmem:[#allocation11 + $0xc4] sm:$0xf]
        %v3107 = vld [vmem:[#allocation11 + $0xc8] sm:$0xf]
        %v3108 = vld [vmem:[#allocation11 + $0xcc] sm:$0xf]
        %v3109 = vld [vmem:[#allocation11 + $0xd0] sm:$0xf]
        %v3110 = vld [vmem:[#allocation11 + $0xd4] sm:$0xf]
        %v3111 = vld [vmem:[#allocation11 + $0xd8] sm:$0xf]
        %v3112 = vld [vmem:[#allocation11 + $0xdc] sm:$0xf]
        %v3113 = vld [vmem:[#allocation11 + $0xe0] sm:$0xf]
        %v3114 = vld [vmem:[#allocation11 + $0xe4] sm:$0xf]
        %v3115 = vld [vmem:[#allocation11 + $0xe8] sm:$0xf]
        %v3116 = vld [vmem:[#allocation11 + $0xec] sm:$0xf]
        %v3117 = vld [vmem:[#allocation11 + $0xf0] sm:$0xf]
        %v3118 = vld [vmem:[#allocation11 + $0xf4] sm:$0xf]
        %v3119 = vld [vmem:[#allocation11 + $0xf8] sm:$0xf]
        %v3120 = vld [vmem:[#allocation11 + $0xfc] sm:$0xf]
        %v3121 = vld [vmem:[%s6] sm:$0x1]
        %v3123 = vperm.slane %v3121, 0
        %v3189 = vunpack.c.l.b16 %v3057
        %v3190 = vunpack.c.l.b16 %v3058
        %v3191 = vunpack.c.l.b16 %v3059
        %v3192 = vunpack.c.l.b16 %v3060
        %v3193 = vunpack.c.l.b16 %v3061
        %v3194 = vunpack.c.l.b16 %v3062
        %v3195 = vunpack.c.l.b16 %v3063
        %v3196 = vunpack.c.l.b16 %v3064
        %v3197 = vunpack.c.l.b16 %v3065
        %v3198 = vunpack.c.l.b16 %v3066
        %v3199 = vunpack.c.l.b16 %v3067
        %v3200 = vunpack.c.l.b16 %v3068
        %v3201 = vunpack.c.l.b16 %v3069
        %v3202 = vunpack.c.l.b16 %v3070
        %v3203 = vunpack.c.l.b16 %v3071
        %v3204 = vunpack.c.l.b16 %v3072
        %v3205 = vunpack.c.l.b16 %v3073
        %v3206 = vunpack.c.l.b16 %v3074
        %v3207 = vunpack.c.l.b16 %v3075
        %v3208 = vunpack.c.l.b16 %v3076
        %v3209 = vunpack.c.l.b16 %v3077
        %v3210 = vunpack.c.l.b16 %v3078
        %v3211 = vunpack.c.l.b16 %v3079
        %v3212 = vunpack.c.l.b16 %v3080
        %v3213 = vunpack.c.l.b16 %v3081
        %v3214 = vunpack.c.l.b16 %v3082
        %v3215 = vunpack.c.l.b16 %v3083
        %v3216 = vunpack.c.l.b16 %v3084
        %v3217 = vunpack.c.l.b16 %v3085
        %v3218 = vunpack.c.l.b16 %v3086
        %v3219 = vunpack.c.l.b16 %v3087
        %v3220 = vunpack.c.l.b16 %v3088
        %v3221 = vunpack.c.l.b16 %v3089
        %v3222 = vunpack.c.l.b16 %v3090
        %v3223 = vunpack.c.l.b16 %v3091
        %v3224 = vunpack.c.l.b16 %v3092
        %v3225 = vunpack.c.l.b16 %v3093
        %v3226 = vunpack.c.l.b16 %v3094
        %v3227 = vunpack.c.l.b16 %v3095
        %v3228 = vunpack.c.l.b16 %v3096
        %v3229 = vunpack.c.l.b16 %v3097
        %v3230 = vunpack.c.l.b16 %v3098
        %v3231 = vunpack.c.l.b16 %v3099
        %v3232 = vunpack.c.l.b16 %v3100
        %v3233 = vunpack.c.l.b16 %v3101
        %v3234 = vunpack.c.l.b16 %v3102
        %v3235 = vunpack.c.l.b16 %v3103
        %v3236 = vunpack.c.l.b16 %v3104
        %v3237 = vunpack.c.l.b16 %v3105
        %v3238 = vunpack.c.l.b16 %v3106
        %v3239 = vunpack.c.l.b16 %v3107
        %v3240 = vunpack.c.l.b16 %v3108
        %v3241 = vunpack.c.l.b16 %v3109
        %v3242 = vunpack.c.l.b16 %v3110
        %v3243 = vunpack.c.l.b16 %v3111
        %v3244 = vunpack.c.l.b16 %v3112
        %v3245 = vunpack.c.l.b16 %v3113
        %v3246 = vunpack.c.l.b16 %v3114
        %v3247 = vunpack.c.l.b16 %v3115
        %v3248 = vunpack.c.l.b16 %v3116
        %v3249 = vunpack.c.l.b16 %v3117
        %v3250 = vunpack.c.l.b16 %v3118
        %v3251 = vunpack.c.l.b16 %v3119
        %v3252 = vunpack.c.l.b16 %v3120
        %v3253 = vpack.c.b16 %v3190, %v3189
        %v3254 = vpack.c.b16 %v3192, %v3191
        %v3255 = vpack.c.b16 %v3194, %v3193
        %v3256 = vpack.c.b16 %v3196, %v3195
        %v3257 = vpack.c.b16 %v3198, %v3197
        %v3258 = vpack.c.b16 %v3200, %v3199
        %v3259 = vpack.c.b16 %v3202, %v3201
        %v3260 = vpack.c.b16 %v3204, %v3203
        %v3261 = vpack.c.b16 %v3206, %v3205
        %v3262 = vpack.c.b16 %v3208, %v3207
        %v3263 = vpack.c.b16 %v3210, %v3209
        %v3264 = vpack.c.b16 %v3212, %v3211
        %v3265 = vpack.c.b16 %v3214, %v3213
        %v3266 = vpack.c.b16 %v3216, %v3215
        %v3267 = vpack.c.b16 %v3218, %v3217
        %v3268 = vpack.c.b16 %v3220, %v3219
        %v3269 = vpack.c.b16 %v3222, %v3221
        %v3270 = vpack.c.b16 %v3224, %v3223
        %v3271 = vpack.c.b16 %v3226, %v3225
        %v3272 = vpack.c.b16 %v3228, %v3227
        %v3273 = vpack.c.b16 %v3230, %v3229
        %v3274 = vpack.c.b16 %v3232, %v3231
        %v3275 = vpack.c.b16 %v3234, %v3233
        %v3276 = vpack.c.b16 %v3236, %v3235
        %v3277 = vpack.c.b16 %v3238, %v3237
        %v3278 = vpack.c.b16 %v3240, %v3239
        %v3279 = vpack.c.b16 %v3242, %v3241
        %v3280 = vpack.c.b16 %v3244, %v3243
        %v3281 = vpack.c.b16 %v3246, %v3245
        %v3282 = vpack.c.b16 %v3248, %v3247
        %v3283 = vpack.c.b16 %v3250, %v3249
        %v3284 = vpack.c.b16 %v3252, %v3251
        %3317 = vmatpush.bf16.msra.mxu0 %v3260
        %3318 = vmatpush.bf16.msra.mxu0 %v3259
        %3319 = vmatpush.bf16.msra.mxu0 %v3258
        %3320 = vmatpush.bf16.msra.mxu0 %v3257
        %3321 = vmatpush.bf16.msra.mxu0 %v3256
        %3322 = vmatpush.bf16.msra.mxu0 %v3255
        %3323 = vmatpush.bf16.msra.mxu0 %v3254
        %3324 = vmatpush.bf16.msra.mxu0 %v3253
        %3325 = vmatmul.bf16.gmra.mxu0 %v3041
        %v3326 = vpop.f32.mrf.mxu0
        %v3327 = vadd.f32 %v3123, %v3326
        %v3328 = vpop.f32.mrf.mxu0
        %v3329 = vadd.f32 %v3123, %v3328
        %3330 = vmatmul.bf16.gmra.mxu0 %v3045
        %v3331 = vpop.f32.mrf.mxu0
        %v3332 = vadd.f32 %v3123, %v3331
        %v3333 = vpop.f32.mrf.mxu0
        %v3334 = vadd.f32 %v3123, %v3333
        %3335 = vmatmul.bf16.gmra.mxu0 %v3049
        %v3336 = vpop.f32.mrf.mxu0
        %v3337 = vadd.f32 %v3123, %v3336
        %v3338 = vpop.f32.mrf.mxu0
        %v3339 = vadd.f32 %v3123, %v3338
        %3340 = vmatmul.bf16.gmra.mxu0 %v3053
        %v3341 = vpop.f32.mrf.mxu0
        %v3342 = vadd.f32 %v3123, %v3341
        %v3343 = vpop.f32.mrf.mxu0
        %v3344 = vadd.f32 %v3123, %v3343
        %3345 = vdwg.mxu0
        %3346 = vmatpush.bf16.msra.mxu0 %v3268
        %3347 = vmatpush.bf16.msra.mxu0 %v3267
        %3348 = vmatpush.bf16.msra.mxu0 %v3266
        %3349 = vmatpush.bf16.msra.mxu0 %v3265
        %3350 = vmatpush.bf16.msra.mxu0 %v3264
        %3351 = vmatpush.bf16.msra.mxu0 %v3263
        %3352 = vmatpush.bf16.msra.mxu0 %v3262
        %3353 = vmatpush.bf16.msra.mxu0 %v3261
        %3354 = vmatmul.bf16.gmra.mxu0 %v3042
        %v3355 = vpop.f32.mrf.mxu0
        %v3356 = vadd.f32 %v3327, %v3355
        %v3357 = vpop.f32.mrf.mxu0
        %v3358 = vadd.f32 %v3329, %v3357
        %3359 = vmatmul.bf16.gmra.mxu0 %v3046
        %v3360 = vpop.f32.mrf.mxu0
        %v3361 = vadd.f32 %v3332, %v3360
        %v3362 = vpop.f32.mrf.mxu0
        %v3363 = vadd.f32 %v3334, %v3362
        %3364 = vmatmul.bf16.gmra.mxu0 %v3050
        %v3365 = vpop.f32.mrf.mxu0
        %v3366 = vadd.f32 %v3337, %v3365
        %v3367 = vpop.f32.mrf.mxu0
        %v3368 = vadd.f32 %v3339, %v3367
        %3369 = vmatmul.bf16.gmra.mxu0 %v3054
        %v3370 = vpop.f32.mrf.mxu0
        %v3371 = vadd.f32 %v3342, %v3370
        %v3372 = vpop.f32.mrf.mxu0
        %v3373 = vadd.f32 %v3344, %v3372
        %3374 = vdwg.mxu0
        %3375 = vmatpush.bf16.msra.mxu0 %v3276
        %3376 = vmatpush.bf16.msra.mxu0 %v3275
        %3377 = vmatpush.bf16.msra.mxu0 %v3274
        %3378 = vmatpush.bf16.msra.mxu0 %v3273
        %3379 = vmatpush.bf16.msra.mxu0 %v3272
        %3380 = vmatpush.bf16.msra.mxu0 %v3271
        %3381 = vmatpush.bf16.msra.mxu0 %v3270
        %3382 = vmatpush.bf16.msra.mxu0 %v3269
        %3383 = vmatmul.bf16.gmra.mxu0 %v3043
        %v3384 = vpop.f32.mrf.mxu0
        %v3385 = vadd.f32 %v3356, %v3384
        %v3386 = vpop.f32.mrf.mxu0
        %v3387 = vadd.f32 %v3358, %v3386
        %3388 = vmatmul.bf16.gmra.mxu0 %v3047
        %v3389 = vpop.f32.mrf.mxu0
        %v3390 = vadd.f32 %v3361, %v3389
        %v3391 = vpop.f32.mrf.mxu0
        %v3392 = vadd.f32 %v3363, %v3391
        %3393 = vmatmul.bf16.gmra.mxu0 %v3051
        %v3394 = vpop.f32.mrf.mxu0
        %v3395 = vadd.f32 %v3366, %v3394
        %v3396 = vpop.f32.mrf.mxu0
        %v3397 = vadd.f32 %v3368, %v3396
        %3398 = vmatmul.bf16.gmra.mxu0 %v3055
        %v3399 = vpop.f32.mrf.mxu0
        %v3400 = vadd.f32 %v3371, %v3399
        %v3401 = vpop.f32.mrf.mxu0
        %v3402 = vadd.f32 %v3373, %v3401
        %3403 = vdwg.mxu0
        %3404 = vmatpush.bf16.msra.mxu0 %v3284
        %3405 = vmatpush.bf16.msra.mxu0 %v3283
        %3406 = vmatpush.bf16.msra.mxu0 %v3282
        %3407 = vmatpush.bf16.msra.mxu0 %v3281
        %3408 = vmatpush.bf16.msra.mxu0 %v3280
        %3409 = vmatpush.bf16.msra.mxu0 %v3279
        %3410 = vmatpush.bf16.msra.mxu0 %v3278
        %3411 = vmatpush.bf16.msra.mxu0 %v3277
        %3412 = vmatmul.bf16.gmra.mxu0 %v3044
        %v3413 = vpop.f32.mrf.mxu0
        %v3414 = vadd.f32 %v3385, %v3413
        %v3415 = vpop.f32.mrf.mxu0
        %v3416 = vadd.f32 %v3387, %v3415
        %3417 = vmatmul.bf16.gmra.mxu0 %v3048
        %v3418 = vpop.f32.mrf.mxu0
        %v3419 = vadd.f32 %v3390, %v3418
        %v3420 = vpop.f32.mrf.mxu0
        %v3421 = vadd.f32 %v3392, %v3420
        %3422 = vmatmul.bf16.gmra.mxu0 %v3052
        %v3423 = vpop.f32.mrf.mxu0
        %v3424 = vadd.f32 %v3395, %v3423
        %v3425 = vpop.f32.mrf.mxu0
        %v3426 = vadd.f32 %v3397, %v3425
        %3427 = vmatmul.bf16.gmra.mxu0 %v3056
        %v3428 = vpop.f32.mrf.mxu0
        %v3429 = vadd.f32 %v3400, %v3428
        %v3430 = vpop.f32.mrf.mxu0
        %v3431 = vadd.f32 %v3402, %v3430
        %3432 = vdwg.mxu0
        %3433 = vst [vmem:[%s378] sm:$0xff] %v3414
        %3434 = vst [vmem:[%s378 + $0x8] sm:$0xff] %v3416
        %3435 = vst [vmem:[%s378 + $0x10] sm:$0xff] %v3419
        %3436 = vst [vmem:[%s378 + $0x18] sm:$0xff] %v3421
        %3437 = vst [vmem:[%s378 + $0x20] sm:$0xff] %v3424
        %3438 = vst [vmem:[%s378 + $0x28] sm:$0xff] %v3426
        %3439 = vst [vmem:[%s378 + $0x30] sm:$0xff] %v3429
        %3440 = vst [vmem:[%s378 + $0x38] sm:$0xff] %v3431
        %s3441 = sand.u32 %s187, 1
        %s3442 = scalar_lea.sflag [#allocation4], %s3441
        %s3443 = sand.u32 %s187, 1
        %s3444 = smul.addr %s3443, 64
        %s3445 = scalar_lea.vmem [#allocation13], %s3444
        // Predicated region
        $region73: #{tpu_custom_call.1} parent=47 // pred_check
          %p3446 = pneg %p197
        $region74: #{tpu_custom_call.1} parent=47 // pred_check_branch
          %3448 = sbr.rel (%p3446) target = $region76
        $region75: #{tpu_custom_call.1} parent=47 // pred_region
          %s3449 = smul.u32 8, %s27
          %3451 = vsyncadd %s3442, 0
          %s3452 = smul.addr %s3449, 8
          %s3453 = scalar_lea.hbm %s7, %s3452
          %s3454 = sshll.u32 %s3445, 4
          %s3455 = int_to_ptr.vmem [resolvable:$true] %s3454
          %s3456 = sshll.u32 %s3453, 4
          %s3457 = int_to_ptr.hbm [resolvable:$true] %s3456
          %3462 = dma.vmem_to_hbm [thread:$0]  %s3455, 1024, %s3457, %s3442, 128, 128, 8
        $region76: #{tpu_custom_call.1} parent=47 // pred_fallthru
          _
      $region48: #{tpu_custom_call.1} parent=5 // pred_fallthru
        _
      %p3463 = scmp.le.s32.totalorder 2, %s22
      // Predicated region
      $region77: #{tpu_custom_call.1} parent=5 // pred_check
        %p3464 = pneg %p3463
      $region78: #{tpu_custom_call.1} parent=5 // pred_check_branch
        %3466 = sbr.rel (%p3464) target = $region80
      $region79: #{tpu_custom_call.1} parent=5 // pred_region
        %s3467 = ssub.s32 %s22, 2
        // Predicated region
        $region81: #{tpu_custom_call.1} parent=79 // pred_check
          %p3468 = pneg %p203
        $region82: #{tpu_custom_call.1} parent=79 // pred_check_branch
          %3470 = sbr.rel (%p3468) target = $region84
        $region83: #{tpu_custom_call.1} parent=79 // pred_region
          %s3471 = sand.u32 %s188, 1
          %s3472 = scalar_lea.sflag [#allocation4], %s3471
          %s3473 = sand.u32 %s188, 1
          %s3474 = smul.addr %s3473, 64
          %s3475 = scalar_lea.vmem [#allocation13], %s3474
          %3477 = dma.done %s3472, 1024
        $region84: #{tpu_custom_call.1} parent=79 // pred_fallthru
          _
      $region80: #{tpu_custom_call.1} parent=5 // pred_fallthru
        _
    $region6: #{tpu_custom_call.1} parent=1 // loop_footer
      %s26 = sadd.s32 1, %s22
    $region7: #{tpu_custom_call.1} parent=1 // loop_footer_branch
      %21 = sbr.rel target = $region3
    $region8: #{tpu_custom_call.1} parent=1 // loop_exit
      _
    %3478 = vsyncpa [#allocation3], 1
    %s3479 = scalar_lea.sflag [#allocation3], 1
    %3480 = vsyncpa %s3479, 1
    %3481 = vsyncpa [#allocation6], 1
    %3482 = vsyncpa [#allocation9], 1
    %3483 = vsyncpa [#allocation12], 1
    %3484 = vsyncpa [#allocation4], 1
    %s3485 = scalar_lea.sflag [#allocation4], 1
    %3486 = vsyncpa %s3485, 1

</llo_original>
